<compile_context>
chip_gen: v5e
topology: v5e:2x2
jax: 0.10.0
libtpu: 0.0.40
codegen_flags: <defaults>
</compile_context>

<pallas_src>
import numpy as np
import jax
import jax.numpy as jnp
from jax.experimental import pallas as pl
from jax.experimental.pallas import tpu as pltpu


def _aa_bilinear_weights(in_size: int, out_size: int) -> np.ndarray:
    """Resize weight matrix (out_size x in_size) matching PyTorch
    F.interpolate(mode='bilinear', antialias=True, align_corners=False)
    (Pillow-style triangle filter, support scaled by max(scale, 1))."""
    scale = in_size / out_size
    filterscale = max(scale, 1.0)
    support = 1.0 * filterscale          # triangle filter support = 1
    inv_fs = 1.0 / filterscale
    W = np.zeros((out_size, in_size), dtype=np.float64)
    for i in range(out_size):
        center = (i + 0.5) * scale
        xmin = max(int(center - support + 0.5), 0)
        xmax = min(int(center + support + 0.5), in_size)
        xs = np.arange(xmin, xmax, dtype=np.float64)
        w = 1.0 - np.abs((xs - center + 0.5) * inv_fs)
        w = np.clip(w, 0.0, None)
        s = w.sum()
        if s > 0.0:
            w = w / s
        W[i, xmin:xmax] = w
    return W.astype(np.float32)


def _gaussian_loss_kernel(x1_ref, x2_ref, bdn_ref, bup_ref, adn_ref, aup_ref,
                          out_ref):
    tb, h, w = x1_ref.shape
    w_s = bdn_ref.shape[1]
    h_s = adn_ref.shape[0]

    d = x1_ref[...] - x2_ref[...]                                # (tb, h, w)

    # Columns down: one big MXU matmul, (tb*h, w) @ (w, w_s).
    q = jnp.dot(d.reshape(tb * h, w), bdn_ref[...],
                preferred_element_type=jnp.float32)              # (tb*h, w_s)
    q3 = q.reshape(tb, h, w_s)

    # Rows down / up: batched matmuls over the tb slices (operands are
    # already narrow, so this is cheap; weights broadcast once).
    a_dn = jnp.broadcast_to(adn_ref[...], (tb, h_s, h))
    a_up = jnp.broadcast_to(aup_ref[...], (tb, h, h_s))
    r = jnp.einsum('bkh,bhw->bkw', a_dn, q3,
                   preferred_element_type=jnp.float32)           # (tb, h_s, w_s)
    u = jnp.einsum('bhk,bkw->bhw', a_up, r,
                   preferred_element_type=jnp.float32)           # (tb, h, w_s)

    # Columns up: (tb*h, w_s) @ (w_s, w), lane-dense output.
    y = jnp.dot(u.reshape(tb * h, w_s), bup_ref[...],
                preferred_element_type=jnp.float32)              # (tb*h, w)

    # Per-program partial sum (no cross-iteration accumulator -> "parallel").
    out_ref[...] = jnp.broadcast_to(jnp.sum(jnp.abs(y)), (1, 1, 1))


def gaussian_loss(img1, img2, scale: int = 64, block_slices=None):
    """JAX/Pallas equivalent of GaussianLoss(scale).forward(img1, img2).
    img1, img2: (N, C, H, W) float arrays."""
    N, C, H, W = img1.shape
    h_s = int(H * (1.0 / scale))
    w_s = int(W * (1.0 / scale))
    if h_s < 1 or w_s < 1:
        raise ValueError("H and W must be >= scale")

    # Factored (low-rank) resize operators; never folded to HxH / WxW.
    wdn_h = _aa_bilinear_weights(H, h_s)                 # (h_s, H)
    wup_h = _aa_bilinear_weights(h_s, H)                 # (H, h_s)
    wdn_w = _aa_bilinear_weights(W, w_s)                 # (w_s, W)
    wup_w = _aa_bilinear_weights(w_s, W)                 # (W, w_s)
    adn = jnp.asarray(wdn_h, jnp.float32)                # (h_s, H)
    aup = jnp.asarray(wup_h, jnp.float32)                # (H, h_s)
    bdn = jnp.asarray(wdn_w.T, jnp.float32)              # (W, w_s)
    bup = jnp.asarray(wup_w.T, jnp.float32)              # (w_s, W)

    nc = N * C
    x1 = jnp.asarray(img1, jnp.float32).reshape(nc, H, W)
    x2 = jnp.asarray(img2, jnp.float32).reshape(nc, H, W)

    # Batch several (n, c) slices per grid step: ~2 MiB of image per input
    # block (amortizes grid overhead, keeps well inside the VMEM budget).
    if block_slices is None:
        block_slices = max(1, min(nc, (2 << 20) // (H * W * 4)))
    tb = int(block_slices)
    num_blocks = (nc + tb - 1) // tb
    pad = num_blocks * tb - nc
    if pad:
        # Zero-padded slices contribute exactly 0 to the |.|-sum.
        zeros = jnp.zeros((pad, H, W), jnp.float32)
        x1 = jnp.concatenate([x1, zeros], axis=0)
        x2 = jnp.concatenate([x2, zeros], axis=0)

    # TODO(synk): optional bf16 matmul path (2x MXU, half the DMA bytes) is
    # left out to keep the strict f32 tolerance of the reference check.
    partials = pl.pallas_call(
        _gaussian_loss_kernel,
        out_shape=jax.ShapeDtypeStruct((num_blocks, 1, 1), jnp.float32),
        grid_spec=pltpu.PrefetchScalarGridSpec(
            num_scalar_prefetch=0,
            grid=(num_blocks,),
            in_specs=[
                pl.BlockSpec((tb, H, W), lambda i: (i, 0, 0)),
                pl.BlockSpec((tb, H, W), lambda i: (i, 0, 0)),
                pl.BlockSpec((W, w_s), lambda i: (0, 0)),
                pl.BlockSpec((w_s, W), lambda i: (0, 0)),
                pl.BlockSpec((h_s, H), lambda i: (0, 0)),
                pl.BlockSpec((H, h_s), lambda i: (0, 0)),
            ],
            out_specs=pl.BlockSpec((1, 1, 1), lambda i: (i, 0, 0)),
        ),
        compiler_params=pltpu.CompilerParams(
            dimension_semantics=("parallel",)),
    )(x1, x2, bdn, bup, adn, aup)

    return jnp.sum(partials) / (N * C * H * W)


if __name__ == "__main__":
    # Small shapes consistent with the module: scale=8 so H=W=64 downsamples
    # to 8x8 and back (default scale=64 would need H, W >= 64*k).
    N, C, H, W = 2, 4, 64, 64
    SCALE = 8

    key = jax.random.PRNGKey(0)
    k1, k2 = jax.random.split(key)
    img1 = jax.random.uniform(k1, (N, C, H, W), dtype=jnp.float32)
    img2 = jax.random.uniform(k2, (N, C, H, W), dtype=jnp.float32)

    # Default blocking (all 8 slices in one grid step).
    loss = jax.block_until_ready(gaussian_loss(img1, img2, scale=SCALE))
    # Also exercise the multi-block + zero-padding + parallel-partials path.
    loss_mb = jax.block_until_ready(
        gaussian_loss(img1, img2, scale=SCALE, block_slices=3))

    # Pure-JAX reference using the *folded* dense operators (independent of
    # the factored path used inside the kernel).
    wdn_h = _aa_bilinear_weights(H, H // SCALE)
    wup_h = _aa_bilinear_weights(H // SCALE, H)
    wdn_w = _aa_bilinear_weights(W, W // SCALE)
    wup_w = _aa_bilinear_weights(W // SCALE, W)
    A = jnp.asarray(wup_h @ wdn_h)           # (H, H)
    Bt = jnp.asarray(wup_w @ wdn_w)          # (W, W)
    d = (img1 - img2).reshape(N * C, H, W)
    y = jnp.einsum("hk,nkw,mw->nhm", A, d, Bt)
    ref = jnp.mean(jnp.abs(y))

    assert jnp.allclose(loss, ref, rtol=1e-4, atol=1e-6), (loss, ref)
    assert jnp.allclose(loss_mb, ref, rtol=1e-4, atol=1e-6), (loss_mb, ref)
    print("KERNEL_OK")
</pallas_src>

<mosaic_0001>
module attributes {stable_mosaic.version = 11 : i64} {
  func.func @_gaussian_loss_kernel(%arg0: i32, %arg1: memref<8x64x64xf32, #tpu.memory_space<vmem>>, %arg2: memref<8x64x64xf32, #tpu.memory_space<vmem>>, %arg3: memref<64x8xf32, #tpu.memory_space<vmem>>, %arg4: memref<8x64xf32, #tpu.memory_space<vmem>>, %arg5: memref<8x64xf32, #tpu.memory_space<vmem>>, %arg6: memref<64x8xf32, #tpu.memory_space<vmem>>, %arg7: memref<1x1x1xf32, #tpu.memory_space<vmem>>) attributes {dimension_semantics = [#tpu.dimension_semantics<parallel>], iteration_bounds = array<i64: 1>, scalar_prefetch = 0 : i64, scratch_operands = 0 : i64, tpu.core_type = #tpu.core_type<tc>, window_params = [{transform_indices = @transform_0, window_bounds = array<i64: 8, 64, 64>}, {transform_indices = @transform_1, window_bounds = array<i64: 8, 64, 64>}, {pipeline_mode = #tpu.pipeline_mode<synchronous>, transform_indices = @transform_2, window_bounds = array<i64: 64, 8>}, {pipeline_mode = #tpu.pipeline_mode<synchronous>, transform_indices = @transform_3, window_bounds = array<i64: 8, 64>}, {pipeline_mode = #tpu.pipeline_mode<synchronous>, transform_indices = @transform_4, window_bounds = array<i64: 8, 64>}, {pipeline_mode = #tpu.pipeline_mode<synchronous>, transform_indices = @transform_5, window_bounds = array<i64: 64, 8>}, {transform_indices = @transform_6, window_bounds = array<i64: 1, 1, 1>}]} {
    %c0 = arith.constant 0 : index
    %c0_0 = arith.constant 0 : index
    %c0_1 = arith.constant 0 : index
    %0 = vector.load %arg1[%c0, %c0_0, %c0_1] : memref<8x64x64xf32, #tpu.memory_space<vmem>>, vector<8x64x64xf32>
    %c0_2 = arith.constant 0 : index
    %c0_3 = arith.constant 0 : index
    %c0_4 = arith.constant 0 : index
    %1 = vector.load %arg2[%c0_2, %c0_3, %c0_4] : memref<8x64x64xf32, #tpu.memory_space<vmem>>, vector<8x64x64xf32>
    %2 = arith.subf %0, %1 : vector<8x64x64xf32>
    %3 = vector.shape_cast %2 : vector<8x64x64xf32> to vector<512x64xf32>
    %c0_5 = arith.constant 0 : index
    %c0_6 = arith.constant 0 : index
    %4 = vector.load %arg3[%c0_5, %c0_6] : memref<64x8xf32, #tpu.memory_space<vmem>>, vector<64x8xf32>
    %cst = arith.constant dense<0.000000e+00> : vector<512x8xf32>
    %5 = tpu.matmul %3, %4, %cst {dimension_numbers = #tpu.dot_dimension_numbers<[1], [0], [0], [1], [0, 0, 1, 1], [], []>} : vector<512x64xf32>, vector<64x8xf32>, vector<512x8xf32> -> vector<512x8xf32>
    %6 = vector.shape_cast %5 : vector<512x8xf32> to vector<8x64x8xf32>
    %c0_7 = arith.constant 0 : index
    %c0_8 = arith.constant 0 : index
    %7 = vector.load %arg5[%c0_7, %c0_8] : memref<8x64xf32, #tpu.memory_space<vmem>>, vector<8x64xf32>
    %8 = vector.shape_cast %7 : vector<8x64xf32> to vector<1x8x64xf32>
    %9 = vector.broadcast %8 : vector<1x8x64xf32> to vector<8x8x64xf32>
    %c0_9 = arith.constant 0 : index
    %c0_10 = arith.constant 0 : index
    %10 = vector.load %arg6[%c0_9, %c0_10] : memref<64x8xf32, #tpu.memory_space<vmem>>, vector<64x8xf32>
    %11 = vector.shape_cast %10 : vector<64x8xf32> to vector<1x64x8xf32>
    %12 = vector.broadcast %11 : vector<1x64x8xf32> to vector<8x64x8xf32>
    "tpu.trace_start"() <{level = 10 : i32, message = "bkh,bhw->bkw"}> : () -> ()
    %cst_11 = arith.constant dense<0.000000e+00> : vector<8x8x8xf32>
    %13 = tpu.matmul %9, %6, %cst_11 {dimension_numbers = #tpu.dot_dimension_numbers<[2], [1], [1], [2], [0, 0, 0, 1, 1, 2], [0], [0]>} : vector<8x8x64xf32>, vector<8x64x8xf32>, vector<8x8x8xf32> -> vector<8x8x8xf32>
    "tpu.trace_stop"() : () -> ()
    "tpu.trace_start"() <{level = 10 : i32, message = "bhk,bkw->bhw"}> : () -> ()
    %cst_12 = arith.constant dense<0.000000e+00> : vector<8x64x8xf32>
    %14 = tpu.matmul %12, %13, %cst_12 {dimension_numbers = #tpu.dot_dimension_numbers<[2], [1], [1], [2], [0, 0, 0, 1, 1, 2], [0], [0]>} : vector<8x64x8xf32>, vector<8x8x8xf32>, vector<8x64x8xf32> -> vector<8x64x8xf32>
    "tpu.trace_stop"() : () -> ()
    %15 = vector.shape_cast %14 : vector<8x64x8xf32> to vector<512x8xf32>
    %c0_13 = arith.constant 0 : index
    %c0_14 = arith.constant 0 : index
    %16 = vector.load %arg4[%c0_13, %c0_14] : memref<8x64xf32, #tpu.memory_space<vmem>>, vector<8x64xf32>
    %cst_15 = arith.constant dense<0.000000e+00> : vector<512x64xf32>
    %17 = tpu.matmul %15, %16, %cst_15 {dimension_numbers = #tpu.dot_dimension_numbers<[1], [0], [0], [1], [0, 0, 1, 1], [], []>} : vector<512x8xf32>, vector<8x64xf32>, vector<512x64xf32> -> vector<512x64xf32>
    %18 = math.absf %17 : vector<512x64xf32>
    %19 = vector.shape_cast %18 : vector<512x64xf32> to vector<1x512x64xf32>
    %cst_16 = arith.constant dense<0.000000e+00> : vector<1xf32>
    %20 = vector.multi_reduction <add>, %19, %cst_16 [1, 2] : vector<1x512x64xf32> to vector<1xf32>
    %21 = vector.shape_cast %20 : vector<1xf32> to vector<1x1x1xf32>
    %22 = vector.extract %21[0, 0, 0] : f32 from vector<1x1x1xf32>
    %23 = vector.broadcast %22 : f32 to vector<1x1x1xf32>
    %c0_17 = arith.constant 0 : index
    %c0_18 = arith.constant 0 : index
    %c0_19 = arith.constant 0 : index
    %24 = vector.load %arg7[%c0_17, %c0_18, %c0_19] : memref<1x1x1xf32, #tpu.memory_space<vmem>>, vector<1x1x1xf32>
    tpu.vector_store %arg7[%c0_17, %c0_18, %c0_19], %23 {strides = array<i32>} : memref<1x1x1xf32, #tpu.memory_space<vmem>>, vector<1x1x1xf32>,
    return
  }
  func.func @transform_0(%arg0: i32) -> (i32, i32, i32) {
    %c0_i32 = arith.constant 0 : i32
    %c0_i32_0 = arith.constant 0 : i32
    %c0_i32_1 = arith.constant 0 : i32
    return %arg0, %c0_i32, %c0_i32_0 : i32, i32, i32
  }
  func.func @transform_1(%arg0: i32) -> (i32, i32, i32) {
    %c0_i32 = arith.constant 0 : i32
    %c0_i32_0 = arith.constant 0 : i32
    %c0_i32_1 = arith.constant 0 : i32
    return %arg0, %c0_i32, %c0_i32_0 : i32, i32, i32
  }
  func.func @transform_2(%arg0: i32) -> (i32, i32) {
    %c0_i32 = arith.constant 0 : i32
    %c0_i32_0 = arith.constant 0 : i32
    %c0_i32_1 = arith.constant 0 : i32
    return %c0_i32, %c0_i32_0 : i32, i32
  }
  func.func @transform_3(%arg0: i32) -> (i32, i32) {
    %c0_i32 = arith.constant 0 : i32
    %c0_i32_0 = arith.constant 0 : i32
    %c0_i32_1 = arith.constant 0 : i32
    return %c0_i32, %c0_i32_0 : i32, i32
  }
  func.func @transform_4(%arg0: i32) -> (i32, i32) {
    %c0_i32 = arith.constant 0 : i32
    %c0_i32_0 = arith.constant 0 : i32
    %c0_i32_1 = arith.constant 0 : i32
    return %c0_i32, %c0_i32_0 : i32, i32
  }
  func.func @transform_5(%arg0: i32) -> (i32, i32) {
    %c0_i32 = arith.constant 0 : i32
    %c0_i32_0 = arith.constant 0 : i32
    %c0_i32_1 = arith.constant 0 : i32
    return %c0_i32, %c0_i32_0 : i32, i32
  }
  func.func @transform_6(%arg0: i32) -> (i32, i32, i32) {
    %c0_i32 = arith.constant 0 : i32
    %c0_i32_0 = arith.constant 0 : i32
    %c0_i32_1 = arith.constant 0 : i32
    return %arg0, %c0_i32, %c0_i32_0 : i32, i32, i32
  }
}

</mosaic_0001>

<llo_original>
// kernel: tpu_custom_call.1
$region0: #{tpu_custom_call.1}
  #allocation0 [shape = 'u32[]', space=smem, size = 0x4, offset = 0x4, fixed_abs, tag = 'smem constant byte address 0x4 - core index']
  #allocation1 [shape = 'u32[72,128]{1,0:T(1,128)}', space=vmem, size = 0x9000, scoped, tag = 'internal scratch']
  %s0 = inlined_call_operand.hbm [shape: f32[8,64,64], index: 0, kind: input, shape index: {}]
  %s1 = inlined_call_operand.hbm [shape: f32[8,64,64], index: 1, kind: input, shape index: {}]
  %s2 = inlined_call_operand.vmem [shape: f32[64,8], index: 2, kind: input, shape index: {}]
  %s3 = inlined_call_operand.vmem [shape: f32[8,64], index: 3, kind: input, shape index: {}]
  %s4 = inlined_call_operand.vmem [shape: f32[8,64], index: 4, kind: input, shape index: {}]
  %s5 = inlined_call_operand.vmem [shape: f32[64,8], index: 5, kind: input, shape index: {}]
  %s6 = inlined_call_operand.hbm [shape: f32[1,1,1], index: 6, kind: output, shape index: {}]
  %s7 = sld [smem:[#allocation0]]
  $region42: #{tpu_custom_call.1} parent=0
    _
  %s9 = ssub.s32 1, %s7
  %s10 = scalar_select 0, %s9, %s7
  $region1: #{tpu_custom_call.1} parent=0
    #allocation2 [shape = 'u8[262144]{0}', space=vmem, size = 0x40000, scoped, tag = 'input window, operand 0, single buffered']
    #allocation3 [shape = 's32[1]{0}', space=sflag, size = 0x4, scoped, tag = 'scoped memory for tpu_custom_call.1']
    #allocation4 [shape = 's32[1]{0}', space=sflag, size = 0x4, scoped, tag = 'scoped memory for tpu_custom_call.1']
    #allocation5 [shape = 'u8[262144]{0}', space=vmem, size = 0x40000, scoped, tag = 'input window, operand 1, single buffered']
    #allocation6 [shape = 's32[1]{0}', space=sflag, size = 0x4, scoped, tag = 'scoped memory for tpu_custom_call.1']
    #allocation7 [shape = 'u8[512]{0}', space=vmem, size = 0x400, scoped, tag = 'output window, operand 0, single buffered']
    %11 = vsyncpa [#allocation3], 0
    %12 = vsyncpa [#allocation6], 0
    %13 = vsyncpa [#allocation4], 0
    // Predicated region
    $region2: #{tpu_custom_call.1} parent=1 // pred_check
      _
    $region3: #{tpu_custom_call.1} parent=1 // pred_check_branch
      %15 = sbr.rel (0) target = $region5
    $region4: #{tpu_custom_call.1} parent=1 // pred_region
      %17 = vsyncadd [#allocation3], 0
      %s18 = sshll.u32 %s0, 4
      %s19 = int_to_ptr.hbm [resolvable:$true] %s18
      %s20 = sshll.u32 [#allocation2], 4
      %s21 = int_to_ptr.vmem [resolvable:$true] %s20
      %26 = dma.hbm_to_vmem [thread:$0]  %s19, 8192, %s21, [#allocation3], 128, 128, 8
    $region5: #{tpu_custom_call.1} parent=1 // pred_fallthru
      _
    // Predicated region
    $region6: #{tpu_custom_call.1} parent=1 // pred_check
      _
    $region7: #{tpu_custom_call.1} parent=1 // pred_check_branch
      %28 = sbr.rel (0) target = $region9
    $region8: #{tpu_custom_call.1} parent=1 // pred_region
      %30 = vsyncadd [#allocation6], 0
      %s31 = sshll.u32 %s1, 4
      %s32 = int_to_ptr.hbm [resolvable:$true] %s31
      %s33 = sshll.u32 [#allocation5], 4
      %s34 = int_to_ptr.vmem [resolvable:$true] %s33
      %39 = dma.hbm_to_vmem [thread:$0]  %s32, 8192, %s34, [#allocation6], 128, 128, 8
    $region9: #{tpu_custom_call.1} parent=1 // pred_fallthru
      _
    // Predicated region
    $region10: #{tpu_custom_call.1} parent=1 // pred_check
      _
    $region11: #{tpu_custom_call.1} parent=1 // pred_check_branch
      %41 = sbr.rel (0) target = $region13
    $region12: #{tpu_custom_call.1} parent=1 // pred_region
      _
    $region13: #{tpu_custom_call.1} parent=1 // pred_fallthru
      _
    // Predicated region
    $region14: #{tpu_custom_call.1} parent=1 // pred_check
      _
    $region15: #{tpu_custom_call.1} parent=1 // pred_check_branch
      %43 = sbr.rel (0) target = $region17
    $region16: #{tpu_custom_call.1} parent=1 // pred_region
      _
    $region17: #{tpu_custom_call.1} parent=1 // pred_fallthru
      _
    // Predicated region
    $region18: #{tpu_custom_call.1} parent=1 // pred_check
      _
    $region19: #{tpu_custom_call.1} parent=1 // pred_check_branch
      %45 = sbr.rel (0) target = $region21
    $region20: #{tpu_custom_call.1} parent=1 // pred_region
      _
    $region21: #{tpu_custom_call.1} parent=1 // pred_fallthru
      _
    // Predicated region
    $region22: #{tpu_custom_call.1} parent=1 // pred_check
      _
    $region23: #{tpu_custom_call.1} parent=1 // pred_check_branch
      %47 = sbr.rel (0) target = $region25
    $region24: #{tpu_custom_call.1} parent=1 // pred_region
      _
    $region25: #{tpu_custom_call.1} parent=1 // pred_fallthru
      _
    // Predicated region
    $region26: #{tpu_custom_call.1} parent=1 // pred_check
      _
    $region27: #{tpu_custom_call.1} parent=1 // pred_check_branch
      %49 = sbr.rel (0) target = $region29
    $region28: #{tpu_custom_call.1} parent=1 // pred_region
      %51 = dma.done [#allocation3], 8192
    $region29: #{tpu_custom_call.1} parent=1 // pred_fallthru
      _
    // Predicated region
    $region30: #{tpu_custom_call.1} parent=1 // pred_check
      _
    $region31: #{tpu_custom_call.1} parent=1 // pred_check_branch
      %53 = sbr.rel (0) target = $region33
    $region32: #{tpu_custom_call.1} parent=1 // pred_region
      %55 = dma.done [#allocation6], 8192
    $region33: #{tpu_custom_call.1} parent=1 // pred_fallthru
      _
    %v56 = vld [vmem:[#allocation2] sm:$0xff]
    %v57 = vld [vmem:[#allocation2 + $0x8] sm:$0xff]
    %v58 = vld [vmem:[#allocation2 + $0x10] sm:$0xff]
    %v59 = vld [vmem:[#allocation2 + $0x18] sm:$0xff]
    %v60 = vld [vmem:[#allocation2 + $0x20] sm:$0xff]
    %v61 = vld [vmem:[#allocation2 + $0x28] sm:$0xff]
    %v62 = vld [vmem:[#allocation2 + $0x30] sm:$0xff]
    %v63 = vld [vmem:[#allocation2 + $0x38] sm:$0xff]
    %v64 = vld [vmem:[#allocation2 + $0x40] sm:$0xff]
    %v65 = vld [vmem:[#allocation2 + $0x48] sm:$0xff]
    %v66 = vld [vmem:[#allocation2 + $0x50] sm:$0xff]
    %v67 = vld [vmem:[#allocation2 + $0x58] sm:$0xff]
    %v68 = vld [vmem:[#allocation2 + $0x60] sm:$0xff]
    %v69 = vld [vmem:[#allocation2 + $0x68] sm:$0xff]
    %v70 = vld [vmem:[#allocation2 + $0x70] sm:$0xff]
    %v71 = vld [vmem:[#allocation2 + $0x78] sm:$0xff]
    %v72 = vld [vmem:[#allocation2 + $0x80] sm:$0xff]
    %v73 = vld [vmem:[#allocation2 + $0x88] sm:$0xff]
    %v74 = vld [vmem:[#allocation2 + $0x90] sm:$0xff]
    %v75 = vld [vmem:[#allocation2 + $0x98] sm:$0xff]
    %v76 = vld [vmem:[#allocation2 + $0xa0] sm:$0xff]
    %v77 = vld [vmem:[#allocation2 + $0xa8] sm:$0xff]
    %v78 = vld [vmem:[#allocation2 + $0xb0] sm:$0xff]
    %v79 = vld [vmem:[#allocation2 + $0xb8] sm:$0xff]
    %v80 = vld [vmem:[#allocation2 + $0xc0] sm:$0xff]
    %v81 = vld [vmem:[#allocation2 + $0xc8] sm:$0xff]
    %v82 = vld [vmem:[#allocation2 + $0xd0] sm:$0xff]
    %v83 = vld [vmem:[#allocation2 + $0xd8] sm:$0xff]
    %v84 = vld [vmem:[#allocation2 + $0xe0] sm:$0xff]
    %v85 = vld [vmem:[#allocation2 + $0xe8] sm:$0xff]
    %v86 = vld [vmem:[#allocation2 + $0xf0] sm:$0xff]
    %v87 = vld [vmem:[#allocation2 + $0xf8] sm:$0xff]
    %v88 = vld [vmem:[#allocation2 + $0x100] sm:$0xff]
    %v89 = vld [vmem:[#allocation2 + $0x108] sm:$0xff]
    %v90 = vld [vmem:[#allocation2 + $0x110] sm:$0xff]
    %v91 = vld [vmem:[#allocation2 + $0x118] sm:$0xff]
    %v92 = vld [vmem:[#allocation2 + $0x120] sm:$0xff]
    %v93 = vld [vmem:[#allocation2 + $0x128] sm:$0xff]
    %v94 = vld [vmem:[#allocation2 + $0x130] sm:$0xff]
    %v95 = vld [vmem:[#allocation2 + $0x138] sm:$0xff]
    %v96 = vld [vmem:[#allocation2 + $0x140] sm:$0xff]
    %v97 = vld [vmem:[#allocation2 + $0x148] sm:$0xff]
    %v98 = vld [vmem:[#allocation2 + $0x150] sm:$0xff]
    %v99 = vld [vmem:[#allocation2 + $0x158] sm:$0xff]
    %v100 = vld [vmem:[#allocation2 + $0x160] sm:$0xff]
    %v101 = vld [vmem:[#allocation2 + $0x168] sm:$0xff]
    %v102 = vld [vmem:[#allocation2 + $0x170] sm:$0xff]
    %v103 = vld [vmem:[#allocation2 + $0x178] sm:$0xff]
    %v104 = vld [vmem:[#allocation2 + $0x180] sm:$0xff]
    %v105 = vld [vmem:[#allocation2 + $0x188] sm:$0xff]
    %v106 = vld [vmem:[#allocation2 + $0x190] sm:$0xff]
    %v107 = vld [vmem:[#allocation2 + $0x198] sm:$0xff]
    %v108 = vld [vmem:[#allocation2 + $0x1a0] sm:$0xff]
    %v109 = vld [vmem:[#allocation2 + $0x1a8] sm:$0xff]
    %v110 = vld [vmem:[#allocation2 + $0x1b0] sm:$0xff]
    %v111 = vld [vmem:[#allocation2 + $0x1b8] sm:$0xff]
    %v112 = vld [vmem:[#allocation2 + $0x1c0] sm:$0xff]
    %v113 = vld [vmem:[#allocation2 + $0x1c8] sm:$0xff]
    %v114 = vld [vmem:[#allocation2 + $0x1d0] sm:$0xff]
    %v115 = vld [vmem:[#allocation2 + $0x1d8] sm:$0xff]
    %v116 = vld [vmem:[#allocation2 + $0x1e0] sm:$0xff]
    %v117 = vld [vmem:[#allocation2 + $0x1e8] sm:$0xff]
    %v118 = vld [vmem:[#allocation2 + $0x1f0] sm:$0xff]
    %v119 = vld [vmem:[#allocation2 + $0x1f8] sm:$0xff]
    %v120 = vld [vmem:[#allocation5] sm:$0xff]
    %v121 = vld [vmem:[#allocation5 + $0x8] sm:$0xff]
    %v122 = vld [vmem:[#allocation5 + $0x10] sm:$0xff]
    %v123 = vld [vmem:[#allocation5 + $0x18] sm:$0xff]
    %v124 = vld [vmem:[#allocation5 + $0x20] sm:$0xff]
    %v125 = vld [vmem:[#allocation5 + $0x28] sm:$0xff]
    %v126 = vld [vmem:[#allocation5 + $0x30] sm:$0xff]
    %v127 = vld [vmem:[#allocation5 + $0x38] sm:$0xff]
    %v128 = vld [vmem:[#allocation5 + $0x40] sm:$0xff]
    %v129 = vld [vmem:[#allocation5 + $0x48] sm:$0xff]
    %v130 = vld [vmem:[#allocation5 + $0x50] sm:$0xff]
    %v131 = vld [vmem:[#allocation5 + $0x58] sm:$0xff]
    %v132 = vld [vmem:[#allocation5 + $0x60] sm:$0xff]
    %v133 = vld [vmem:[#allocation5 + $0x68] sm:$0xff]
    %v134 = vld [vmem:[#allocation5 + $0x70] sm:$0xff]
    %v135 = vld [vmem:[#allocation5 + $0x78] sm:$0xff]
    %v136 = vld [vmem:[#allocation5 + $0x80] sm:$0xff]
    %v137 = vld [vmem:[#allocation5 + $0x88] sm:$0xff]
    %v138 = vld [vmem:[#allocation5 + $0x90] sm:$0xff]
    %v139 = vld [vmem:[#allocation5 + $0x98] sm:$0xff]
    %v140 = vld [vmem:[#allocation5 + $0xa0] sm:$0xff]
    %v141 = vld [vmem:[#allocation5 + $0xa8] sm:$0xff]
    %v142 = vld [vmem:[#allocation5 + $0xb0] sm:$0xff]
    %v143 = vld [vmem:[#allocation5 + $0xb8] sm:$0xff]
    %v144 = vld [vmem:[#allocation5 + $0xc0] sm:$0xff]
    %v145 = vld [vmem:[#allocation5 + $0xc8] sm:$0xff]
    %v146 = vld [vmem:[#allocation5 + $0xd0] sm:$0xff]
    %v147 = vld [vmem:[#allocation5 + $0xd8] sm:$0xff]
    %v148 = vld [vmem:[#allocation5 + $0xe0] sm:$0xff]
    %v149 = vld [vmem:[#allocation5 + $0xe8] sm:$0xff]
    %v150 = vld [vmem:[#allocation5 + $0xf0] sm:$0xff]
    %v151 = vld [vmem:[#allocation5 + $0xf8] sm:$0xff]
    %v152 = vld [vmem:[#allocation5 + $0x100] sm:$0xff]
    %v153 = vld [vmem:[#allocation5 + $0x108] sm:$0xff]
    %v154 = vld [vmem:[#allocation5 + $0x110] sm:$0xff]
    %v155 = vld [vmem:[#allocation5 + $0x118] sm:$0xff]
    %v156 = vld [vmem:[#allocation5 + $0x120] sm:$0xff]
    %v157 = vld [vmem:[#allocation5 + $0x128] sm:$0xff]
    %v158 = vld [vmem:[#allocation5 + $0x130] sm:$0xff]
    %v159 = vld [vmem:[#allocation5 + $0x138] sm:$0xff]
    %v160 = vld [vmem:[#allocation5 + $0x140] sm:$0xff]
    %v161 = vld [vmem:[#allocation5 + $0x148] sm:$0xff]
    %v162 = vld [vmem:[#allocation5 + $0x150] sm:$0xff]
    %v163 = vld [vmem:[#allocation5 + $0x158] sm:$0xff]
    %v164 = vld [vmem:[#allocation5 + $0x160] sm:$0xff]
    %v165 = vld [vmem:[#allocation5 + $0x168] sm:$0xff]
    %v166 = vld [vmem:[#allocation5 + $0x170] sm:$0xff]
    %v167 = vld [vmem:[#allocation5 + $0x178] sm:$0xff]
    %v168 = vld [vmem:[#allocation5 + $0x180] sm:$0xff]
    %v169 = vld [vmem:[#allocation5 + $0x188] sm:$0xff]
    %v170 = vld [vmem:[#allocation5 + $0x190] sm:$0xff]
    %v171 = vld [vmem:[#allocation5 + $0x198] sm:$0xff]
    %v172 = vld [vmem:[#allocation5 + $0x1a0] sm:$0xff]
    %v173 = vld [vmem:[#allocation5 + $0x1a8] sm:$0xff]
    %v174 = vld [vmem:[#allocation5 + $0x1b0] sm:$0xff]
    %v175 = vld [vmem:[#allocation5 + $0x1b8] sm:$0xff]
    %v176 = vld [vmem:[#allocation5 + $0x1c0] sm:$0xff]
    %v177 = vld [vmem:[#allocation5 + $0x1c8] sm:$0xff]
    %v178 = vld [vmem:[#allocation5 + $0x1d0] sm:$0xff]
    %v179 = vld [vmem:[#allocation5 + $0x1d8] sm:$0xff]
    %v180 = vld [vmem:[#allocation5 + $0x1e0] sm:$0xff]
    %v181 = vld [vmem:[#allocation5 + $0x1e8] sm:$0xff]
    %v182 = vld [vmem:[#allocation5 + $0x1f0] sm:$0xff]
    %v183 = vld [vmem:[#allocation5 + $0x1f8] sm:$0xff]
    %v184 = vsub.f32 %v56, %v120
    %v185 = vsub.f32 %v57, %v121
    %v186 = vsub.f32 %v58, %v122
    %v187 = vsub.f32 %v59, %v123
    %v188 = vsub.f32 %v60, %v124
    %v189 = vsub.f32 %v61, %v125
    %v190 = vsub.f32 %v62, %v126
    %v191 = vsub.f32 %v63, %v127
    %v192 = vsub.f32 %v64, %v128
    %v193 = vsub.f32 %v65, %v129
    %v194 = vsub.f32 %v66, %v130
    %v195 = vsub.f32 %v67, %v131
    %v196 = vsub.f32 %v68, %v132
    %v197 = vsub.f32 %v69, %v133
    %v198 = vsub.f32 %v70, %v134
    %v199 = vsub.f32 %v71, %v135
    %v200 = vsub.f32 %v72, %v136
    %v201 = vsub.f32 %v73, %v137
    %v202 = vsub.f32 %v74, %v138
    %v203 = vsub.f32 %v75, %v139
    %v204 = vsub.f32 %v76, %v140
    %v205 = vsub.f32 %v77, %v141
    %v206 = vsub.f32 %v78, %v142
    %v207 = vsub.f32 %v79, %v143
    %v208 = vsub.f32 %v80, %v144
    %v209 = vsub.f32 %v81, %v145
    %v210 = vsub.f32 %v82, %v146
    %v211 = vsub.f32 %v83, %v147
    %v212 = vsub.f32 %v84, %v148
    %v213 = vsub.f32 %v85, %v149
    %v214 = vsub.f32 %v86, %v150
    %v215 = vsub.f32 %v87, %v151
    %v216 = vsub.f32 %v88, %v152
    %v217 = vsub.f32 %v89, %v153
    %v218 = vsub.f32 %v90, %v154
    %v219 = vsub.f32 %v91, %v155
    %v220 = vsub.f32 %v92, %v156
    %v221 = vsub.f32 %v93, %v157
    %v222 = vsub.f32 %v94, %v158
    %v223 = vsub.f32 %v95, %v159
    %v224 = vsub.f32 %v96, %v160
    %v225 = vsub.f32 %v97, %v161
    %v226 = vsub.f32 %v98, %v162
    %v227 = vsub.f32 %v99, %v163
    %v228 = vsub.f32 %v100, %v164
    %v229 = vsub.f32 %v101, %v165
    %v230 = vsub.f32 %v102, %v166
    %v231 = vsub.f32 %v103, %v167
    %v232 = vsub.f32 %v104, %v168
    %v233 = vsub.f32 %v105, %v169
    %v234 = vsub.f32 %v106, %v170
    %v235 = vsub.f32 %v107, %v171
    %v236 = vsub.f32 %v108, %v172
    %v237 = vsub.f32 %v109, %v173
    %v238 = vsub.f32 %v110, %v174
    %v239 = vsub.f32 %v111, %v175
    %v240 = vsub.f32 %v112, %v176
    %v241 = vsub.f32 %v113, %v177
    %v242 = vsub.f32 %v114, %v178
    %v243 = vsub.f32 %v115, %v179
    %v244 = vsub.f32 %v116, %v180
    %v245 = vsub.f32 %v117, %v181
    %v246 = vsub.f32 %v118, %v182
    %v247 = vsub.f32 %v119, %v183
    %v248 = vld [vmem:[%s2] sm:$0xff]
    %v249 = vld [vmem:[%s2 + $0x8] sm:$0xff]
    %v250 = vld [vmem:[%s2 + $0x10] sm:$0xff]
    %v251 = vld [vmem:[%s2 + $0x18] sm:$0xff]
    %v252 = vld [vmem:[%s2 + $0x20] sm:$0xff]
    %v253 = vld [vmem:[%s2 + $0x28] sm:$0xff]
    %v254 = vld [vmem:[%s2 + $0x30] sm:$0xff]
    %v255 = vld [vmem:[%s2 + $0x38] sm:$0xff]
    %vm256 = vcmask 523264
    %v258 = vsel %vm256, %v184, 0
    %v261 = vsel %vm256, %v185, 0
    %v264 = vsel %vm256, %v186, 0
    %v267 = vsel %vm256, %v187, 0
    %v270 = vsel %vm256, %v188, 0
    %v273 = vsel %vm256, %v189, 0
    %v276 = vsel %vm256, %v190, 0
    %v279 = vsel %vm256, %v191, 0
    %v282 = vsel %vm256, %v192, 0
    %v285 = vsel %vm256, %v193, 0
    %v288 = vsel %vm256, %v194, 0
    %v291 = vsel %vm256, %v195, 0
    %v294 = vsel %vm256, %v196, 0
    %v297 = vsel %vm256, %v197, 0
    %v300 = vsel %vm256, %v198, 0
    %v303 = vsel %vm256, %v199, 0
    %v306 = vsel %vm256, %v200, 0
    %v309 = vsel %vm256, %v201, 0
    %v312 = vsel %vm256, %v202, 0
    %v315 = vsel %vm256, %v203, 0
    %v318 = vsel %vm256, %v204, 0
    %v321 = vsel %vm256, %v205, 0
    %v324 = vsel %vm256, %v206, 0
    %v327 = vsel %vm256, %v207, 0
    %v330 = vsel %vm256, %v208, 0
    %v333 = vsel %vm256, %v209, 0
    %v336 = vsel %vm256, %v210, 0
    %v339 = vsel %vm256, %v211, 0
    %v342 = vsel %vm256, %v212, 0
    %v345 = vsel %vm256, %v213, 0
    %v348 = vsel %vm256, %v214, 0
    %v351 = vsel %vm256, %v215, 0
    %v354 = vsel %vm256, %v216, 0
    %v357 = vsel %vm256, %v217, 0
    %v360 = vsel %vm256, %v218, 0
    %v363 = vsel %vm256, %v219, 0
    %v366 = vsel %vm256, %v220, 0
    %v369 = vsel %vm256, %v221, 0
    %v372 = vsel %vm256, %v222, 0
    %v375 = vsel %vm256, %v223, 0
    %v378 = vsel %vm256, %v224, 0
    %v381 = vsel %vm256, %v225, 0
    %v384 = vsel %vm256, %v226, 0
    %v387 = vsel %vm256, %v227, 0
    %v390 = vsel %vm256, %v228, 0
    %v393 = vsel %vm256, %v229, 0
    %v396 = vsel %vm256, %v230, 0
    %v399 = vsel %vm256, %v231, 0
    %v402 = vsel %vm256, %v232, 0
    %v405 = vsel %vm256, %v233, 0
    %v408 = vsel %vm256, %v234, 0
    %v411 = vsel %vm256, %v235, 0
    %v414 = vsel %vm256, %v236, 0
    %v417 = vsel %vm256, %v237, 0
    %v420 = vsel %vm256, %v238, 0
    %v423 = vsel %vm256, %v239, 0
    %v426 = vsel %vm256, %v240, 0
    %v429 = vsel %vm256, %v241, 0
    %v432 = vsel %vm256, %v242, 0
    %v435 = vsel %vm256, %v243, 0
    %v438 = vsel %vm256, %v244, 0
    %v441 = vsel %vm256, %v245, 0
    %v444 = vsel %vm256, %v246, 0
    %v447 = vsel %vm256, %v247, 0
    %449 = vmatpush.msra.mxu0 0.0
    %450 = vmatpush.msra.mxu0 0.0
    %451 = vmatpush.msra.mxu0 0.0
    %452 = vmatpush.msra.mxu0 0.0
    %453 = vmatpush.msra.mxu0 0.0
    %454 = vmatpush.msra.mxu0 0.0
    %455 = vmatpush.msra.mxu0 0.0
    %456 = vmatpush.msra.mxu0 0.0
    %457 = vmatpush.msra.mxu0 %v255
    %458 = vmatpush.msra.mxu0 %v254
    %459 = vmatpush.msra.mxu0 %v253
    %460 = vmatpush.msra.mxu0 %v252
    %461 = vmatpush.msra.mxu0 %v251
    %462 = vmatpush.msra.mxu0 %v250
    %463 = vmatpush.msra.mxu0 %v249
    %464 = vmatpush.msra.mxu0 %v248
    %465 = vmatmul.f32.gmra.mxu0 %v258
    %v466 = vpop.f32.mrf.mxu0
    %v467 = vadd.f32 0.0, %v466
    %468 = vmatmul.f32.gmra.mxu0 %v261
    %v469 = vpop.f32.mrf.mxu0
    %v470 = vadd.f32 0.0, %v469
    %471 = vmatmul.f32.gmra.mxu0 %v264
    %v472 = vpop.f32.mrf.mxu0
    %v473 = vadd.f32 0.0, %v472
    %474 = vmatmul.f32.gmra.mxu0 %v267
    %v475 = vpop.f32.mrf.mxu0
    %v476 = vadd.f32 0.0, %v475
    %477 = vmatmul.f32.gmra.mxu0 %v270
    %v478 = vpop.f32.mrf.mxu0
    %v479 = vadd.f32 0.0, %v478
    %480 = vmatmul.f32.gmra.mxu0 %v273
    %v481 = vpop.f32.mrf.mxu0
    %v482 = vadd.f32 0.0, %v481
    %483 = vmatmul.f32.gmra.mxu0 %v276
    %v484 = vpop.f32.mrf.mxu0
    %v485 = vadd.f32 0.0, %v484
    %486 = vmatmul.f32.gmra.mxu0 %v279
    %v487 = vpop.f32.mrf.mxu0
    %v488 = vadd.f32 0.0, %v487
    %489 = vmatmul.f32.gmra.mxu0 %v282
    %v490 = vpop.f32.mrf.mxu0
    %v491 = vadd.f32 0.0, %v490
    %492 = vmatmul.f32.gmra.mxu0 %v285
    %v493 = vpop.f32.mrf.mxu0
    %v494 = vadd.f32 0.0, %v493
    %495 = vmatmul.f32.gmra.mxu0 %v288
    %v496 = vpop.f32.mrf.mxu0
    %v497 = vadd.f32 0.0, %v496
    %498 = vmatmul.f32.gmra.mxu0 %v291
    %v499 = vpop.f32.mrf.mxu0
    %v500 = vadd.f32 0.0, %v499
    %501 = vmatmul.f32.gmra.mxu0 %v294
    %v502 = vpop.f32.mrf.mxu0
    %v503 = vadd.f32 0.0, %v502
    %504 = vmatmul.f32.gmra.mxu0 %v297
    %v505 = vpop.f32.mrf.mxu0
    %v506 = vadd.f32 0.0, %v505
    %507 = vmatmul.f32.gmra.mxu0 %v300
    %v508 = vpop.f32.mrf.mxu0
    %v509 = vadd.f32 0.0, %v508
    %510 = vmatmul.f32.gmra.mxu0 %v303
    %v511 = vpop.f32.mrf.mxu0
    %v512 = vadd.f32 0.0, %v511
    %513 = vmatmul.f32.gmra.mxu0 %v306
    %v514 = vpop.f32.mrf.mxu0
    %v515 = vadd.f32 0.0, %v514
    %516 = vmatmul.f32.gmra.mxu0 %v309
    %v517 = vpop.f32.mrf.mxu0
    %v518 = vadd.f32 0.0, %v517
    %519 = vmatmul.f32.gmra.mxu0 %v312
    %v520 = vpop.f32.mrf.mxu0
    %v521 = vadd.f32 0.0, %v520
    %522 = vmatmul.f32.gmra.mxu0 %v315
    %v523 = vpop.f32.mrf.mxu0
    %v524 = vadd.f32 0.0, %v523
    %525 = vmatmul.f32.gmra.mxu0 %v318
    %v526 = vpop.f32.mrf.mxu0
    %v527 = vadd.f32 0.0, %v526
    %528 = vmatmul.f32.gmra.mxu0 %v321
    %v529 = vpop.f32.mrf.mxu0
    %v530 = vadd.f32 0.0, %v529
    %531 = vmatmul.f32.gmra.mxu0 %v324
    %v532 = vpop.f32.mrf.mxu0
    %v533 = vadd.f32 0.0, %v532
    %534 = vmatmul.f32.gmra.mxu0 %v327
    %v535 = vpop.f32.mrf.mxu0
    %v536 = vadd.f32 0.0, %v535
    %537 = vmatmul.f32.gmra.mxu0 %v330
    %v538 = vpop.f32.mrf.mxu0
    %v539 = vadd.f32 0.0, %v538
    %540 = vmatmul.f32.gmra.mxu0 %v333
    %v541 = vpop.f32.mrf.mxu0
    %v542 = vadd.f32 0.0, %v541
    %543 = vmatmul.f32.gmra.mxu0 %v336
    %v544 = vpop.f32.mrf.mxu0
    %v545 = vadd.f32 0.0, %v544
    %546 = vmatmul.f32.gmra.mxu0 %v339
    %v547 = vpop.f32.mrf.mxu0
    %v548 = vadd.f32 0.0, %v547
    %549 = vmatmul.f32.gmra.mxu0 %v342
    %v550 = vpop.f32.mrf.mxu0
    %v551 = vadd.f32 0.0, %v550
    %552 = vmatmul.f32.gmra.mxu0 %v345
    %v553 = vpop.f32.mrf.mxu0
    %v554 = vadd.f32 0.0, %v553
    %555 = vmatmul.f32.gmra.mxu0 %v348
    %v556 = vpop.f32.mrf.mxu0
    %v557 = vadd.f32 0.0, %v556
    %558 = vmatmul.f32.gmra.mxu0 %v351
    %v559 = vpop.f32.mrf.mxu0
    %v560 = vadd.f32 0.0, %v559
    %561 = vmatmul.f32.gmra.mxu0 %v354
    %v562 = vpop.f32.mrf.mxu0
    %v563 = vadd.f32 0.0, %v562
    %564 = vmatmul.f32.gmra.mxu0 %v357
    %v565 = vpop.f32.mrf.mxu0
    %v566 = vadd.f32 0.0, %v565
    %567 = vmatmul.f32.gmra.mxu0 %v360
    %v568 = vpop.f32.mrf.mxu0
    %v569 = vadd.f32 0.0, %v568
    %570 = vmatmul.f32.gmra.mxu0 %v363
    %v571 = vpop.f32.mrf.mxu0
    %v572 = vadd.f32 0.0, %v571
    %573 = vmatmul.f32.gmra.mxu0 %v366
    %v574 = vpop.f32.mrf.mxu0
    %v575 = vadd.f32 0.0, %v574
    %576 = vmatmul.f32.gmra.mxu0 %v369
    %v577 = vpop.f32.mrf.mxu0
    %v578 = vadd.f32 0.0, %v577
    %579 = vmatmul.f32.gmra.mxu0 %v372
    %v580 = vpop.f32.mrf.mxu0
    %v581 = vadd.f32 0.0, %v580
    %582 = vmatmul.f32.gmra.mxu0 %v375
    %v583 = vpop.f32.mrf.mxu0
    %v584 = vadd.f32 0.0, %v583
    %585 = vmatmul.f32.gmra.mxu0 %v378
    %v586 = vpop.f32.mrf.mxu0
    %v587 = vadd.f32 0.0, %v586
    %588 = vmatmul.f32.gmra.mxu0 %v381
    %v589 = vpop.f32.mrf.mxu0
    %v590 = vadd.f32 0.0, %v589
    %591 = vmatmul.f32.gmra.mxu0 %v384
    %v592 = vpop.f32.mrf.mxu0
    %v593 = vadd.f32 0.0, %v592
    %594 = vmatmul.f32.gmra.mxu0 %v387
    %v595 = vpop.f32.mrf.mxu0
    %v596 = vadd.f32 0.0, %v595
    %597 = vmatmul.f32.gmra.mxu0 %v390
    %v598 = vpop.f32.mrf.mxu0
    %v599 = vadd.f32 0.0, %v598
    %600 = vmatmul.f32.gmra.mxu0 %v393
    %v601 = vpop.f32.mrf.mxu0
    %v602 = vadd.f32 0.0, %v601
    %603 = vmatmul.f32.gmra.mxu0 %v396
    %v604 = vpop.f32.mrf.mxu0
    %v605 = vadd.f32 0.0, %v604
    %606 = vmatmul.f32.gmra.mxu0 %v399
    %v607 = vpop.f32.mrf.mxu0
    %v608 = vadd.f32 0.0, %v607
    %609 = vmatmul.f32.gmra.mxu0 %v402
    %v610 = vpop.f32.mrf.mxu0
    %v611 = vadd.f32 0.0, %v610
    %612 = vmatmul.f32.gmra.mxu0 %v405
    %v613 = vpop.f32.mrf.mxu0
    %v614 = vadd.f32 0.0, %v613
    %615 = vmatmul.f32.gmra.mxu0 %v408
    %v616 = vpop.f32.mrf.mxu0
    %v617 = vadd.f32 0.0, %v616
    %618 = vmatmul.f32.gmra.mxu0 %v411
    %v619 = vpop.f32.mrf.mxu0
    %v620 = vadd.f32 0.0, %v619
    %621 = vmatmul.f32.gmra.mxu0 %v414
    %v622 = vpop.f32.mrf.mxu0
    %v623 = vadd.f32 0.0, %v622
    %624 = vmatmul.f32.gmra.mxu0 %v417
    %v625 = vpop.f32.mrf.mxu0
    %v626 = vadd.f32 0.0, %v625
    %627 = vmatmul.f32.gmra.mxu0 %v420
    %v628 = vpop.f32.mrf.mxu0
    %v629 = vadd.f32 0.0, %v628
    %630 = vmatmul.f32.gmra.mxu0 %v423
    %v631 = vpop.f32.mrf.mxu0
    %v632 = vadd.f32 0.0, %v631
    %633 = vmatmul.f32.gmra.mxu0 %v426
    %v634 = vpop.f32.mrf.mxu0
    %v635 = vadd.f32 0.0, %v634
    %636 = vmatmul.f32.gmra.mxu0 %v429
    %v637 = vpop.f32.mrf.mxu0
    %v638 = vadd.f32 0.0, %v637
    %639 = vmatmul.f32.gmra.mxu0 %v432
    %v640 = vpop.f32.mrf.mxu0
    %v641 = vadd.f32 0.0, %v640
    %642 = vmatmul.f32.gmra.mxu0 %v435
    %v643 = vpop.f32.mrf.mxu0
    %v644 = vadd.f32 0.0, %v643
    %645 = vmatmul.f32.gmra.mxu0 %v438
    %v646 = vpop.f32.mrf.mxu0
    %v647 = vadd.f32 0.0, %v646
    %648 = vmatmul.f32.gmra.mxu0 %v441
    %v649 = vpop.f32.mrf.mxu0
    %v650 = vadd.f32 0.0, %v649
    %651 = vmatmul.f32.gmra.mxu0 %v444
    %v652 = vpop.f32.mrf.mxu0
    %v653 = vadd.f32 0.0, %v652
    %654 = vmatmul.f32.gmra.mxu0 %v447
    %v655 = vpop.f32.mrf.mxu0
    %v656 = vadd.f32 0.0, %v655
    %657 = vdwg.mxu0
    %v658 = vld [vmem:[%s4] sm:$0xff]
    %v659 = vld [vmem:[%s5] sm:$0xff]
    %v660 = vld [vmem:[%s5 + $0x8] sm:$0xff]
    %v661 = vld [vmem:[%s5 + $0x10] sm:$0xff]
    %v662 = vld [vmem:[%s5 + $0x18] sm:$0xff]
    %v663 = vld [vmem:[%s5 + $0x20] sm:$0xff]
    %v664 = vld [vmem:[%s5 + $0x28] sm:$0xff]
    %v665 = vld [vmem:[%s5 + $0x30] sm:$0xff]
    %v666 = vld [vmem:[%s5 + $0x38] sm:$0xff]
    %v668 = vsel %vm256, %v658, 0
    %670 = vmatpush.msra.mxu0 0.0
    %671 = vmatpush.msra.mxu0 0.0
    %672 = vmatpush.msra.mxu0 0.0
    %673 = vmatpush.msra.mxu0 0.0
    %674 = vmatpush.msra.mxu0 0.0
    %675 = vmatpush.msra.mxu0 0.0
    %676 = vmatpush.msra.mxu0 0.0
    %677 = vmatpush.msra.mxu0 0.0
    %678 = vmatpush.msra.mxu0 %v488
    %679 = vmatpush.msra.mxu0 %v485
    %680 = vmatpush.msra.mxu0 %v482
    %681 = vmatpush.msra.mxu0 %v479
    %682 = vmatpush.msra.mxu0 %v476
    %683 = vmatpush.msra.mxu0 %v473
    %684 = vmatpush.msra.mxu0 %v470
    %685 = vmatpush.msra.mxu0 %v467
    %686 = vmatmul.f32.gmra.mxu0 %v668
    %v687 = vpop.f32.mrf.mxu0
    %v688 = vadd.f32 0.0, %v687
    %689 = vdwg.mxu0
    %690 = vmatpush.msra.mxu0 0.0
    %691 = vmatpush.msra.mxu0 0.0
    %692 = vmatpush.msra.mxu0 0.0
    %693 = vmatpush.msra.mxu0 0.0
    %694 = vmatpush.msra.mxu0 0.0
    %695 = vmatpush.msra.mxu0 0.0
    %696 = vmatpush.msra.mxu0 0.0
    %697 = vmatpush.msra.mxu0 0.0
    %698 = vmatpush.msra.mxu0 %v512
    %699 = vmatpush.msra.mxu0 %v509
    %700 = vmatpush.msra.mxu0 %v506
    %701 = vmatpush.msra.mxu0 %v503
    %702 = vmatpush.msra.mxu0 %v500
    %703 = vmatpush.msra.mxu0 %v497
    %704 = vmatpush.msra.mxu0 %v494
    %705 = vmatpush.msra.mxu0 %v491
    %706 = vmatmul.f32.gmra.mxu0 %v668
    %v707 = vpop.f32.mrf.mxu0
    %v708 = vadd.f32 0.0, %v707
    %709 = vdwg.mxu0
    %710 = vmatpush.msra.mxu0 0.0
    %711 = vmatpush.msra.mxu0 0.0
    %712 = vmatpush.msra.mxu0 0.0
    %713 = vmatpush.msra.mxu0 0.0
    %714 = vmatpush.msra.mxu0 0.0
    %715 = vmatpush.msra.mxu0 0.0
    %716 = vmatpush.msra.mxu0 0.0
    %717 = vmatpush.msra.mxu0 0.0
    %718 = vmatpush.msra.mxu0 %v536
    %719 = vmatpush.msra.mxu0 %v533
    %720 = vmatpush.msra.mxu0 %v530
    %721 = vmatpush.msra.mxu0 %v527
    %722 = vmatpush.msra.mxu0 %v524
    %723 = vmatpush.msra.mxu0 %v521
    %724 = vmatpush.msra.mxu0 %v518
    %725 = vmatpush.msra.mxu0 %v515
    %726 = vmatmul.f32.gmra.mxu0 %v668
    %v727 = vpop.f32.mrf.mxu0
    %v728 = vadd.f32 0.0, %v727
    %729 = vdwg.mxu0
    %730 = vmatpush.msra.mxu0 0.0
    %731 = vmatpush.msra.mxu0 0.0
    %732 = vmatpush.msra.mxu0 0.0
    %733 = vmatpush.msra.mxu0 0.0
    %734 = vmatpush.msra.mxu0 0.0
    %735 = vmatpush.msra.mxu0 0.0
    %736 = vmatpush.msra.mxu0 0.0
    %737 = vmatpush.msra.mxu0 0.0
    %738 = vmatpush.msra.mxu0 %v560
    %739 = vmatpush.msra.mxu0 %v557
    %740 = vmatpush.msra.mxu0 %v554
    %741 = vmatpush.msra.mxu0 %v551
    %742 = vmatpush.msra.mxu0 %v548
    %743 = vmatpush.msra.mxu0 %v545
    %744 = vmatpush.msra.mxu0 %v542
    %745 = vmatpush.msra.mxu0 %v539
    %746 = vmatmul.f32.gmra.mxu0 %v668
    %v747 = vpop.f32.mrf.mxu0
    %v748 = vadd.f32 0.0, %v747
    %749 = vdwg.mxu0
    %750 = vmatpush.msra.mxu0 0.0
    %751 = vmatpush.msra.mxu0 0.0
    %752 = vmatpush.msra.mxu0 0.0
    %753 = vmatpush.msra.mxu0 0.0
    %754 = vmatpush.msra.mxu0 0.0
    %755 = vmatpush.msra.mxu0 0.0
    %756 = vmatpush.msra.mxu0 0.0
    %757 = vmatpush.msra.mxu0 0.0
    %758 = vmatpush.msra.mxu0 %v584
    %759 = vmatpush.msra.mxu0 %v581
    %760 = vmatpush.msra.mxu0 %v578
    %761 = vmatpush.msra.mxu0 %v575
    %762 = vmatpush.msra.mxu0 %v572
    %763 = vmatpush.msra.mxu0 %v569
    %764 = vmatpush.msra.mxu0 %v566
    %765 = vmatpush.msra.mxu0 %v563
    %766 = vmatmul.f32.gmra.mxu0 %v668
    %v767 = vpop.f32.mrf.mxu0
    %v768 = vadd.f32 0.0, %v767
    %769 = vdwg.mxu0
    %770 = vmatpush.msra.mxu0 0.0
    %771 = vmatpush.msra.mxu0 0.0
    %772 = vmatpush.msra.mxu0 0.0
    %773 = vmatpush.msra.mxu0 0.0
    %774 = vmatpush.msra.mxu0 0.0
    %775 = vmatpush.msra.mxu0 0.0
    %776 = vmatpush.msra.mxu0 0.0
    %777 = vmatpush.msra.mxu0 0.0
    %778 = vmatpush.msra.mxu0 %v608
    %779 = vmatpush.msra.mxu0 %v605
    %780 = vmatpush.msra.mxu0 %v602
    %781 = vmatpush.msra.mxu0 %v599
    %782 = vmatpush.msra.mxu0 %v596
    %783 = vmatpush.msra.mxu0 %v593
    %784 = vmatpush.msra.mxu0 %v590
    %785 = vmatpush.msra.mxu0 %v587
    %786 = vmatmul.f32.gmra.mxu0 %v668
    %v787 = vpop.f32.mrf.mxu0
    %v788 = vadd.f32 0.0, %v787
    %789 = vdwg.mxu0
    %790 = vmatpush.msra.mxu0 0.0
    %791 = vmatpush.msra.mxu0 0.0
    %792 = vmatpush.msra.mxu0 0.0
    %793 = vmatpush.msra.mxu0 0.0
    %794 = vmatpush.msra.mxu0 0.0
    %795 = vmatpush.msra.mxu0 0.0
    %796 = vmatpush.msra.mxu0 0.0
    %797 = vmatpush.msra.mxu0 0.0
    %798 = vmatpush.msra.mxu0 %v632
    %799 = vmatpush.msra.mxu0 %v629
    %800 = vmatpush.msra.mxu0 %v626
    %801 = vmatpush.msra.mxu0 %v623
    %802 = vmatpush.msra.mxu0 %v620
    %803 = vmatpush.msra.mxu0 %v617
    %804 = vmatpush.msra.mxu0 %v614
    %805 = vmatpush.msra.mxu0 %v611
    %806 = vmatmul.f32.gmra.mxu0 %v668
    %v807 = vpop.f32.mrf.mxu0
    %v808 = vadd.f32 0.0, %v807
    %809 = vdwg.mxu0
    %810 = vmatpush.msra.mxu0 0.0
    %811 = vmatpush.msra.mxu0 0.0
    %812 = vmatpush.msra.mxu0 0.0
    %813 = vmatpush.msra.mxu0 0.0
    %814 = vmatpush.msra.mxu0 0.0
    %815 = vmatpush.msra.mxu0 0.0
    %816 = vmatpush.msra.mxu0 0.0
    %817 = vmatpush.msra.mxu0 0.0
    %818 = vmatpush.msra.mxu0 %v656
    %819 = vmatpush.msra.mxu0 %v653
    %820 = vmatpush.msra.mxu0 %v650
    %821 = vmatpush.msra.mxu0 %v647
    %822 = vmatpush.msra.mxu0 %v644
    %823 = vmatpush.msra.mxu0 %v641
    %824 = vmatpush.msra.mxu0 %v638
    %825 = vmatpush.msra.mxu0 %v635
    %826 = vmatmul.f32.gmra.mxu0 %v668
    %v827 = vpop.f32.mrf.mxu0
    %v828 = vadd.f32 0.0, %v827
    %829 = vdwg.mxu0
    %vm830 = vcmask 64512
    %v832 = vsel %vm830, %v659, 0
    %v835 = vsel %vm830, %v660, 0
    %v838 = vsel %vm830, %v661, 0
    %v841 = vsel %vm830, %v662, 0
    %v844 = vsel %vm830, %v663, 0
    %v847 = vsel %vm830, %v664, 0
    %v850 = vsel %vm830, %v665, 0
    %v853 = vsel %vm830, %v666, 0
    %855 = vmatpush.msra.mxu0 0.0
    %856 = vmatpush.msra.mxu0 0.0
    %857 = vmatpush.msra.mxu0 0.0
    %858 = vmatpush.msra.mxu0 0.0
    %859 = vmatpush.msra.mxu0 0.0
    %860 = vmatpush.msra.mxu0 0.0
    %861 = vmatpush.msra.mxu0 0.0
    %862 = vmatpush.msra.mxu0 0.0
    %863 = vmatpush.msra.mxu0 0.0
    %864 = vmatpush.msra.mxu0 0.0
    %865 = vmatpush.msra.mxu0 0.0
    %866 = vmatpush.msra.mxu0 0.0
    %867 = vmatpush.msra.mxu0 0.0
    %868 = vmatpush.msra.mxu0 0.0
    %869 = vmatpush.msra.mxu0 0.0
    %870 = vmatpush.msra.mxu0 %v688
    %871 = vmatmul.f32.gmra.mxu0 %v832
    %v872 = vpop.f32.mrf.mxu0
    %v873 = vadd.f32 0.0, %v872
    %874 = vmatmul.f32.gmra.mxu0 %v835
    %v875 = vpop.f32.mrf.mxu0
    %v876 = vadd.f32 0.0, %v875
    %877 = vmatmul.f32.gmra.mxu0 %v838
    %v878 = vpop.f32.mrf.mxu0
    %v879 = vadd.f32 0.0, %v878
    %880 = vmatmul.f32.gmra.mxu0 %v841
    %v881 = vpop.f32.mrf.mxu0
    %v882 = vadd.f32 0.0, %v881
    %883 = vmatmul.f32.gmra.mxu0 %v844
    %v884 = vpop.f32.mrf.mxu0
    %v885 = vadd.f32 0.0, %v884
    %886 = vmatmul.f32.gmra.mxu0 %v847
    %v887 = vpop.f32.mrf.mxu0
    %v888 = vadd.f32 0.0, %v887
    %889 = vmatmul.f32.gmra.mxu0 %v850
    %v890 = vpop.f32.mrf.mxu0
    %v891 = vadd.f32 0.0, %v890
    %892 = vmatmul.f32.gmra.mxu0 %v853
    %v893 = vpop.f32.mrf.mxu0
    %v894 = vadd.f32 0.0, %v893
    %895 = vdwg.mxu0
    %896 = vmatpush.msra.mxu0 0.0
    %897 = vmatpush.msra.mxu0 0.0
    %898 = vmatpush.msra.mxu0 0.0
    %899 = vmatpush.msra.mxu0 0.0
    %900 = vmatpush.msra.mxu0 0.0
    %901 = vmatpush.msra.mxu0 0.0
    %902 = vmatpush.msra.mxu0 0.0
    %903 = vmatpush.msra.mxu0 0.0
    %904 = vmatpush.msra.mxu0 0.0
    %905 = vmatpush.msra.mxu0 0.0
    %906 = vmatpush.msra.mxu0 0.0
    %907 = vmatpush.msra.mxu0 0.0
    %908 = vmatpush.msra.mxu0 0.0
    %909 = vmatpush.msra.mxu0 0.0
    %910 = vmatpush.msra.mxu0 0.0
    %911 = vmatpush.msra.mxu0 %v708
    %912 = vmatmul.f32.gmra.mxu0 %v832
    %v913 = vpop.f32.mrf.mxu0
    %v914 = vadd.f32 0.0, %v913
    %915 = vmatmul.f32.gmra.mxu0 %v835
    %v916 = vpop.f32.mrf.mxu0
    %v917 = vadd.f32 0.0, %v916
    %918 = vmatmul.f32.gmra.mxu0 %v838
    %v919 = vpop.f32.mrf.mxu0
    %v920 = vadd.f32 0.0, %v919
    %921 = vmatmul.f32.gmra.mxu0 %v841
    %v922 = vpop.f32.mrf.mxu0
    %v923 = vadd.f32 0.0, %v922
    %924 = vmatmul.f32.gmra.mxu0 %v844
    %v925 = vpop.f32.mrf.mxu0
    %v926 = vadd.f32 0.0, %v925
    %927 = vmatmul.f32.gmra.mxu0 %v847
    %v928 = vpop.f32.mrf.mxu0
    %v929 = vadd.f32 0.0, %v928
    %930 = vmatmul.f32.gmra.mxu0 %v850
    %v931 = vpop.f32.mrf.mxu0
    %v932 = vadd.f32 0.0, %v931
    %933 = vmatmul.f32.gmra.mxu0 %v853
    %v934 = vpop.f32.mrf.mxu0
    %v935 = vadd.f32 0.0, %v934
    %936 = vdwg.mxu0
    %937 = vmatpush.msra.mxu0 0.0
    %938 = vmatpush.msra.mxu0 0.0
    %939 = vmatpush.msra.mxu0 0.0
    %940 = vmatpush.msra.mxu0 0.0
    %941 = vmatpush.msra.mxu0 0.0
    %942 = vmatpush.msra.mxu0 0.0
    %943 = vmatpush.msra.mxu0 0.0
    %944 = vmatpush.msra.mxu0 0.0
    %945 = vmatpush.msra.mxu0 0.0
    %946 = vmatpush.msra.mxu0 0.0
    %947 = vmatpush.msra.mxu0 0.0
    %948 = vmatpush.msra.mxu0 0.0
    %949 = vmatpush.msra.mxu0 0.0
    %950 = vmatpush.msra.mxu0 0.0
    %951 = vmatpush.msra.mxu0 0.0
    %952 = vmatpush.msra.mxu0 %v728
    %953 = vmatmul.f32.gmra.mxu0 %v832
    %v954 = vpop.f32.mrf.mxu0
    %v955 = vadd.f32 0.0, %v954
    %956 = vmatmul.f32.gmra.mxu0 %v835
    %v957 = vpop.f32.mrf.mxu0
    %v958 = vadd.f32 0.0, %v957
    %959 = vmatmul.f32.gmra.mxu0 %v838
    %v960 = vpop.f32.mrf.mxu0
    %v961 = vadd.f32 0.0, %v960
    %962 = vmatmul.f32.gmra.mxu0 %v841
    %v963 = vpop.f32.mrf.mxu0
    %v964 = vadd.f32 0.0, %v963
    %965 = vmatmul.f32.gmra.mxu0 %v844
    %v966 = vpop.f32.mrf.mxu0
    %v967 = vadd.f32 0.0, %v966
    %968 = vmatmul.f32.gmra.mxu0 %v847
    %v969 = vpop.f32.mrf.mxu0
    %v970 = vadd.f32 0.0, %v969
    %971 = vmatmul.f32.gmra.mxu0 %v850
    %v972 = vpop.f32.mrf.mxu0
    %v973 = vadd.f32 0.0, %v972
    %974 = vmatmul.f32.gmra.mxu0 %v853
    %v975 = vpop.f32.mrf.mxu0
    %v976 = vadd.f32 0.0, %v975
    %977 = vdwg.mxu0
    %978 = vmatpush.msra.mxu0 0.0
    %979 = vmatpush.msra.mxu0 0.0
    %980 = vmatpush.msra.mxu0 0.0
    %981 = vmatpush.msra.mxu0 0.0
    %982 = vmatpush.msra.mxu0 0.0
    %983 = vmatpush.msra.mxu0 0.0
    %984 = vmatpush.msra.mxu0 0.0
    %985 = vmatpush.msra.mxu0 0.0
    %986 = vmatpush.msra.mxu0 0.0
    %987 = vmatpush.msra.mxu0 0.0
    %988 = vmatpush.msra.mxu0 0.0
    %989 = vmatpush.msra.mxu0 0.0
    %990 = vmatpush.msra.mxu0 0.0
    %991 = vmatpush.msra.mxu0 0.0
    %992 = vmatpush.msra.mxu0 0.0
    %993 = vmatpush.msra.mxu0 %v748
    %994 = vmatmul.f32.gmra.mxu0 %v832
    %v995 = vpop.f32.mrf.mxu0
    %v996 = vadd.f32 0.0, %v995
    %997 = vmatmul.f32.gmra.mxu0 %v835
    %v998 = vpop.f32.mrf.mxu0
    %v999 = vadd.f32 0.0, %v998
    %1000 = vmatmul.f32.gmra.mxu0 %v838
    %v1001 = vpop.f32.mrf.mxu0
    %v1002 = vadd.f32 0.0, %v1001
    %1003 = vmatmul.f32.gmra.mxu0 %v841
    %v1004 = vpop.f32.mrf.mxu0
    %v1005 = vadd.f32 0.0, %v1004
    %1006 = vmatmul.f32.gmra.mxu0 %v844
    %v1007 = vpop.f32.mrf.mxu0
    %v1008 = vadd.f32 0.0, %v1007
    %1009 = vmatmul.f32.gmra.mxu0 %v847
    %v1010 = vpop.f32.mrf.mxu0
    %v1011 = vadd.f32 0.0, %v1010
    %1012 = vmatmul.f32.gmra.mxu0 %v850
    %v1013 = vpop.f32.mrf.mxu0
    %v1014 = vadd.f32 0.0, %v1013
    %1015 = vmatmul.f32.gmra.mxu0 %v853
    %v1016 = vpop.f32.mrf.mxu0
    %v1017 = vadd.f32 0.0, %v1016
    %1018 = vdwg.mxu0
    %1019 = vmatpush.msra.mxu0 0.0
    %1020 = vmatpush.msra.mxu0 0.0
    %1021 = vmatpush.msra.mxu0 0.0
    %1022 = vmatpush.msra.mxu0 0.0
    %1023 = vmatpush.msra.mxu0 0.0
    %1024 = vmatpush.msra.mxu0 0.0
    %1025 = vmatpush.msra.mxu0 0.0
    %1026 = vmatpush.msra.mxu0 0.0
    %1027 = vmatpush.msra.mxu0 0.0
    %1028 = vmatpush.msra.mxu0 0.0
    %1029 = vmatpush.msra.mxu0 0.0
    %1030 = vmatpush.msra.mxu0 0.0
    %1031 = vmatpush.msra.mxu0 0.0
    %1032 = vmatpush.msra.mxu0 0.0
    %1033 = vmatpush.msra.mxu0 0.0
    %1034 = vmatpush.msra.mxu0 %v768
    %1035 = vmatmul.f32.gmra.mxu0 %v832
    %v1036 = vpop.f32.mrf.mxu0
    %v1037 = vadd.f32 0.0, %v1036
    %1038 = vmatmul.f32.gmra.mxu0 %v835
    %v1039 = vpop.f32.mrf.mxu0
    %v1040 = vadd.f32 0.0, %v1039
    %1041 = vmatmul.f32.gmra.mxu0 %v838
    %v1042 = vpop.f32.mrf.mxu0
    %v1043 = vadd.f32 0.0, %v1042
    %1044 = vmatmul.f32.gmra.mxu0 %v841
    %v1045 = vpop.f32.mrf.mxu0
    %v1046 = vadd.f32 0.0, %v1045
    %1047 = vmatmul.f32.gmra.mxu0 %v844
    %v1048 = vpop.f32.mrf.mxu0
    %v1049 = vadd.f32 0.0, %v1048
    %1050 = vmatmul.f32.gmra.mxu0 %v847
    %v1051 = vpop.f32.mrf.mxu0
    %v1052 = vadd.f32 0.0, %v1051
    %1053 = vmatmul.f32.gmra.mxu0 %v850
    %v1054 = vpop.f32.mrf.mxu0
    %v1055 = vadd.f32 0.0, %v1054
    %1056 = vmatmul.f32.gmra.mxu0 %v853
    %v1057 = vpop.f32.mrf.mxu0
    %v1058 = vadd.f32 0.0, %v1057
    %1059 = vdwg.mxu0
    %1060 = vmatpush.msra.mxu0 0.0
    %1061 = vmatpush.msra.mxu0 0.0
    %1062 = vmatpush.msra.mxu0 0.0
    %1063 = vmatpush.msra.mxu0 0.0
    %1064 = vmatpush.msra.mxu0 0.0
    %1065 = vmatpush.msra.mxu0 0.0
    %1066 = vmatpush.msra.mxu0 0.0
    %1067 = vmatpush.msra.mxu0 0.0
    %1068 = vmatpush.msra.mxu0 0.0
    %1069 = vmatpush.msra.mxu0 0.0
    %1070 = vmatpush.msra.mxu0 0.0
    %1071 = vmatpush.msra.mxu0 0.0
    %1072 = vmatpush.msra.mxu0 0.0
    %1073 = vmatpush.msra.mxu0 0.0
    %1074 = vmatpush.msra.mxu0 0.0
    %1075 = vmatpush.msra.mxu0 %v788
    %1076 = vmatmul.f32.gmra.mxu0 %v832
    %v1077 = vpop.f32.mrf.mxu0
    %v1078 = vadd.f32 0.0, %v1077
    %1079 = vmatmul.f32.gmra.mxu0 %v835
    %v1080 = vpop.f32.mrf.mxu0
    %v1081 = vadd.f32 0.0, %v1080
    %1082 = vmatmul.f32.gmra.mxu0 %v838
    %v1083 = vpop.f32.mrf.mxu0
    %v1084 = vadd.f32 0.0, %v1083
    %1085 = vmatmul.f32.gmra.mxu0 %v841
    %v1086 = vpop.f32.mrf.mxu0
    %v1087 = vadd.f32 0.0, %v1086
    %1088 = vmatmul.f32.gmra.mxu0 %v844
    %v1089 = vpop.f32.mrf.mxu0
    %v1090 = vadd.f32 0.0, %v1089
    %1091 = vmatmul.f32.gmra.mxu0 %v847
    %v1092 = vpop.f32.mrf.mxu0
    %v1093 = vadd.f32 0.0, %v1092
    %1094 = vmatmul.f32.gmra.mxu0 %v850
    %v1095 = vpop.f32.mrf.mxu0
    %v1096 = vadd.f32 0.0, %v1095
    %1097 = vmatmul.f32.gmra.mxu0 %v853
    %v1098 = vpop.f32.mrf.mxu0
    %v1099 = vadd.f32 0.0, %v1098
    %1100 = vdwg.mxu0
    %1101 = vmatpush.msra.mxu0 0.0
    %1102 = vmatpush.msra.mxu0 0.0
    %1103 = vmatpush.msra.mxu0 0.0
    %1104 = vmatpush.msra.mxu0 0.0
    %1105 = vmatpush.msra.mxu0 0.0
    %1106 = vmatpush.msra.mxu0 0.0
    %1107 = vmatpush.msra.mxu0 0.0
    %1108 = vmatpush.msra.mxu0 0.0
    %1109 = vmatpush.msra.mxu0 0.0
    %1110 = vmatpush.msra.mxu0 0.0
    %1111 = vmatpush.msra.mxu0 0.0
    %1112 = vmatpush.msra.mxu0 0.0
    %1113 = vmatpush.msra.mxu0 0.0
    %1114 = vmatpush.msra.mxu0 0.0
    %1115 = vmatpush.msra.mxu0 0.0
    %1116 = vmatpush.msra.mxu0 %v808
    %1117 = vmatmul.f32.gmra.mxu0 %v832
    %v1118 = vpop.f32.mrf.mxu0
    %v1119 = vadd.f32 0.0, %v1118
    %1120 = vmatmul.f32.gmra.mxu0 %v835
    %v1121 = vpop.f32.mrf.mxu0
    %v1122 = vadd.f32 0.0, %v1121
    %1123 = vmatmul.f32.gmra.mxu0 %v838
    %v1124 = vpop.f32.mrf.mxu0
    %v1125 = vadd.f32 0.0, %v1124
    %1126 = vmatmul.f32.gmra.mxu0 %v841
    %v1127 = vpop.f32.mrf.mxu0
    %v1128 = vadd.f32 0.0, %v1127
    %1129 = vmatmul.f32.gmra.mxu0 %v844
    %v1130 = vpop.f32.mrf.mxu0
    %v1131 = vadd.f32 0.0, %v1130
    %1132 = vmatmul.f32.gmra.mxu0 %v847
    %v1133 = vpop.f32.mrf.mxu0
    %v1134 = vadd.f32 0.0, %v1133
    %1135 = vmatmul.f32.gmra.mxu0 %v850
    %v1136 = vpop.f32.mrf.mxu0
    %v1137 = vadd.f32 0.0, %v1136
    %1138 = vmatmul.f32.gmra.mxu0 %v853
    %v1139 = vpop.f32.mrf.mxu0
    %v1140 = vadd.f32 0.0, %v1139
    %1141 = vdwg.mxu0
    %1142 = vmatpush.msra.mxu0 0.0
    %1143 = vmatpush.msra.mxu0 0.0
    %1144 = vmatpush.msra.mxu0 0.0
    %1145 = vmatpush.msra.mxu0 0.0
    %1146 = vmatpush.msra.mxu0 0.0
    %1147 = vmatpush.msra.mxu0 0.0
    %1148 = vmatpush.msra.mxu0 0.0
    %1149 = vmatpush.msra.mxu0 0.0
    %1150 = vmatpush.msra.mxu0 0.0
    %1151 = vmatpush.msra.mxu0 0.0
    %1152 = vmatpush.msra.mxu0 0.0
    %1153 = vmatpush.msra.mxu0 0.0
    %1154 = vmatpush.msra.mxu0 0.0
    %1155 = vmatpush.msra.mxu0 0.0
    %1156 = vmatpush.msra.mxu0 0.0
    %1157 = vmatpush.msra.mxu0 %v828
    %1158 = vmatmul.f32.gmra.mxu0 %v832
    %v1159 = vpop.f32.mrf.mxu0
    %v1160 = vadd.f32 0.0, %v1159
    %1161 = vmatmul.f32.gmra.mxu0 %v835
    %v1162 = vpop.f32.mrf.mxu0
    %v1163 = vadd.f32 0.0, %v1162
    %1164 = vmatmul.f32.gmra.mxu0 %v838
    %v1165 = vpop.f32.mrf.mxu0
    %v1166 = vadd.f32 0.0, %v1165
    %1167 = vmatmul.f32.gmra.mxu0 %v841
    %v1168 = vpop.f32.mrf.mxu0
    %v1169 = vadd.f32 0.0, %v1168
    %1170 = vmatmul.f32.gmra.mxu0 %v844
    %v1171 = vpop.f32.mrf.mxu0
    %v1172 = vadd.f32 0.0, %v1171
    %1173 = vmatmul.f32.gmra.mxu0 %v847
    %v1174 = vpop.f32.mrf.mxu0
    %v1175 = vadd.f32 0.0, %v1174
    %1176 = vmatmul.f32.gmra.mxu0 %v850
    %v1177 = vpop.f32.mrf.mxu0
    %v1178 = vadd.f32 0.0, %v1177
    %1179 = vmatmul.f32.gmra.mxu0 %v853
    %v1180 = vpop.f32.mrf.mxu0
    %v1181 = vadd.f32 0.0, %v1180
    %1182 = vdwg.mxu0
    %v1183 = vld [vmem:[%s3] sm:$0xff]
    %v1185 = vsel %vm830, %v873, 0
    %v1188 = vsel %vm830, %v876, 0
    %v1191 = vsel %vm830, %v879, 0
    %v1194 = vsel %vm830, %v882, 0
    %v1197 = vsel %vm830, %v885, 0
    %v1200 = vsel %vm830, %v888, 0
    %v1203 = vsel %vm830, %v891, 0
    %v1206 = vsel %vm830, %v894, 0
    %v1209 = vsel %vm830, %v914, 0
    %v1212 = vsel %vm830, %v917, 0
    %v1215 = vsel %vm830, %v920, 0
    %v1218 = vsel %vm830, %v923, 0
    %v1221 = vsel %vm830, %v926, 0
    %v1224 = vsel %vm830, %v929, 0
    %v1227 = vsel %vm830, %v932, 0
    %v1230 = vsel %vm830, %v935, 0
    %v1233 = vsel %vm830, %v955, 0
    %v1236 = vsel %vm830, %v958, 0
    %v1239 = vsel %vm830, %v961, 0
    %v1242 = vsel %vm830, %v964, 0
    %v1245 = vsel %vm830, %v967, 0
    %v1248 = vsel %vm830, %v970, 0
    %v1251 = vsel %vm830, %v973, 0
    %v1254 = vsel %vm830, %v976, 0
    %v1257 = vsel %vm830, %v996, 0
    %v1260 = vsel %vm830, %v999, 0
    %v1263 = vsel %vm830, %v1002, 0
    %v1266 = vsel %vm830, %v1005, 0
    %v1269 = vsel %vm830, %v1008, 0
    %v1272 = vsel %vm830, %v1011, 0
    %v1275 = vsel %vm830, %v1014, 0
    %v1278 = vsel %vm830, %v1017, 0
    %v1281 = vsel %vm830, %v1037, 0
    %v1284 = vsel %vm830, %v1040, 0
    %v1287 = vsel %vm830, %v1043, 0
    %v1290 = vsel %vm830, %v1046, 0
    %v1293 = vsel %vm830, %v1049, 0
    %v1296 = vsel %vm830, %v1052, 0
    %v1299 = vsel %vm830, %v1055, 0
    %v1302 = vsel %vm830, %v1058, 0
    %v1305 = vsel %vm830, %v1078, 0
    %v1308 = vsel %vm830, %v1081, 0
    %v1311 = vsel %vm830, %v1084, 0
    %v1314 = vsel %vm830, %v1087, 0
    %v1317 = vsel %vm830, %v1090, 0
    %v1320 = vsel %vm830, %v1093, 0
    %v1323 = vsel %vm830, %v1096, 0
    %v1326 = vsel %vm830, %v1099, 0
    %v1329 = vsel %vm830, %v1119, 0
    %v1332 = vsel %vm830, %v1122, 0
    %v1335 = vsel %vm830, %v1125, 0
    %v1338 = vsel %vm830, %v1128, 0
    %v1341 = vsel %vm830, %v1131, 0
    %v1344 = vsel %vm830, %v1134, 0
    %v1347 = vsel %vm830, %v1137, 0
    %v1350 = vsel %vm830, %v1140, 0
    %v1353 = vsel %vm830, %v1160, 0
    %v1356 = vsel %vm830, %v1163, 0
    %v1359 = vsel %vm830, %v1166, 0
    %v1362 = vsel %vm830, %v1169, 0
    %v1365 = vsel %vm830, %v1172, 0
    %v1368 = vsel %vm830, %v1175, 0
    %v1371 = vsel %vm830, %v1178, 0
    %v1374 = vsel %vm830, %v1181, 0
    %1376 = vmatpush.msra.mxu0 0.0
    %1377 = vmatpush.msra.mxu0 0.0
    %1378 = vmatpush.msra.mxu0 0.0
    %1379 = vmatpush.msra.mxu0 0.0
    %1380 = vmatpush.msra.mxu0 0.0
    %1381 = vmatpush.msra.mxu0 0.0
    %1382 = vmatpush.msra.mxu0 0.0
    %1383 = vmatpush.msra.mxu0 0.0
    %1384 = vmatpush.msra.mxu0 0.0
    %1385 = vmatpush.msra.mxu0 0.0
    %1386 = vmatpush.msra.mxu0 0.0
    %1387 = vmatpush.msra.mxu0 0.0
    %1388 = vmatpush.msra.mxu0 0.0
    %1389 = vmatpush.msra.mxu0 0.0
    %1390 = vmatpush.msra.mxu0 0.0
    %1391 = vmatpush.msra.mxu0 %v1183
    %1392 = vmatmul.f32.gmra.mxu0 %v1185
    %v1393 = vpop.f32.mrf.mxu0
    %v1394 = vadd.f32 0.0, %v1393
    %1395 = vmatmul.f32.gmra.mxu0 %v1188
    %v1396 = vpop.f32.mrf.mxu0
    %v1397 = vadd.f32 0.0, %v1396
    %1398 = vmatmul.f32.gmra.mxu0 %v1191
    %v1399 = vpop.f32.mrf.mxu0
    %v1400 = vadd.f32 0.0, %v1399
    %1401 = vmatmul.f32.gmra.mxu0 %v1194
    %v1402 = vpop.f32.mrf.mxu0
    %v1403 = vadd.f32 0.0, %v1402
    %1404 = vmatmul.f32.gmra.mxu0 %v1197
    %v1405 = vpop.f32.mrf.mxu0
    %v1406 = vadd.f32 0.0, %v1405
    %1407 = vmatmul.f32.gmra.mxu0 %v1200
    %v1408 = vpop.f32.mrf.mxu0
    %v1409 = vadd.f32 0.0, %v1408
    %1410 = vmatmul.f32.gmra.mxu0 %v1203
    %v1411 = vpop.f32.mrf.mxu0
    %v1412 = vadd.f32 0.0, %v1411
    %1413 = vmatmul.f32.gmra.mxu0 %v1206
    %v1414 = vpop.f32.mrf.mxu0
    %v1415 = vadd.f32 0.0, %v1414
    %1416 = vmatmul.f32.gmra.mxu0 %v1209
    %v1417 = vpop.f32.mrf.mxu0
    %v1418 = vadd.f32 0.0, %v1417
    %1419 = vmatmul.f32.gmra.mxu0 %v1212
    %v1420 = vpop.f32.mrf.mxu0
    %v1421 = vadd.f32 0.0, %v1420
    %1422 = vmatmul.f32.gmra.mxu0 %v1215
    %v1423 = vpop.f32.mrf.mxu0
    %v1424 = vadd.f32 0.0, %v1423
    %1425 = vmatmul.f32.gmra.mxu0 %v1218
    %v1426 = vpop.f32.mrf.mxu0
    %v1427 = vadd.f32 0.0, %v1426
    %1428 = vmatmul.f32.gmra.mxu0 %v1221
    %v1429 = vpop.f32.mrf.mxu0
    %v1430 = vadd.f32 0.0, %v1429
    %1431 = vmatmul.f32.gmra.mxu0 %v1224
    %v1432 = vpop.f32.mrf.mxu0
    %v1433 = vadd.f32 0.0, %v1432
    %1434 = vmatmul.f32.gmra.mxu0 %v1227
    %v1435 = vpop.f32.mrf.mxu0
    %v1436 = vadd.f32 0.0, %v1435
    %1437 = vmatmul.f32.gmra.mxu0 %v1230
    %v1438 = vpop.f32.mrf.mxu0
    %v1439 = vadd.f32 0.0, %v1438
    %1440 = vmatmul.f32.gmra.mxu0 %v1233
    %v1441 = vpop.f32.mrf.mxu0
    %v1442 = vadd.f32 0.0, %v1441
    %1443 = vmatmul.f32.gmra.mxu0 %v1236
    %v1444 = vpop.f32.mrf.mxu0
    %v1445 = vadd.f32 0.0, %v1444
    %1446 = vmatmul.f32.gmra.mxu0 %v1239
    %v1447 = vpop.f32.mrf.mxu0
    %v1448 = vadd.f32 0.0, %v1447
    %1449 = vmatmul.f32.gmra.mxu0 %v1242
    %v1450 = vpop.f32.mrf.mxu0
    %v1451 = vadd.f32 0.0, %v1450
    %1452 = vmatmul.f32.gmra.mxu0 %v1245
    %v1453 = vpop.f32.mrf.mxu0
    %v1454 = vadd.f32 0.0, %v1453
    %1455 = vmatmul.f32.gmra.mxu0 %v1248
    %v1456 = vpop.f32.mrf.mxu0
    %v1457 = vadd.f32 0.0, %v1456
    %1458 = vmatmul.f32.gmra.mxu0 %v1251
    %v1459 = vpop.f32.mrf.mxu0
    %v1460 = vadd.f32 0.0, %v1459
    %1461 = vmatmul.f32.gmra.mxu0 %v1254
    %v1462 = vpop.f32.mrf.mxu0
    %v1463 = vadd.f32 0.0, %v1462
    %1464 = vmatmul.f32.gmra.mxu0 %v1257
    %v1465 = vpop.f32.mrf.mxu0
    %v1466 = vadd.f32 0.0, %v1465
    %1467 = vmatmul.f32.gmra.mxu0 %v1260
    %v1468 = vpop.f32.mrf.mxu0
    %v1469 = vadd.f32 0.0, %v1468
    %1470 = vmatmul.f32.gmra.mxu0 %v1263
    %v1471 = vpop.f32.mrf.mxu0
    %v1472 = vadd.f32 0.0, %v1471
    %1473 = vmatmul.f32.gmra.mxu0 %v1266
    %v1474 = vpop.f32.mrf.mxu0
    %v1475 = vadd.f32 0.0, %v1474
    %1476 = vmatmul.f32.gmra.mxu0 %v1269
    %v1477 = vpop.f32.mrf.mxu0
    %v1478 = vadd.f32 0.0, %v1477
    %1479 = vmatmul.f32.gmra.mxu0 %v1272
    %v1480 = vpop.f32.mrf.mxu0
    %v1481 = vadd.f32 0.0, %v1480
    %1482 = vmatmul.f32.gmra.mxu0 %v1275
    %v1483 = vpop.f32.mrf.mxu0
    %v1484 = vadd.f32 0.0, %v1483
    %1485 = vmatmul.f32.gmra.mxu0 %v1278
    %v1486 = vpop.f32.mrf.mxu0
    %v1487 = vadd.f32 0.0, %v1486
    %1488 = vmatmul.f32.gmra.mxu0 %v1281
    %v1489 = vpop.f32.mrf.mxu0
    %v1490 = vadd.f32 0.0, %v1489
    %1491 = vmatmul.f32.gmra.mxu0 %v1284
    %v1492 = vpop.f32.mrf.mxu0
    %v1493 = vadd.f32 0.0, %v1492
    %1494 = vmatmul.f32.gmra.mxu0 %v1287
    %v1495 = vpop.f32.mrf.mxu0
    %v1496 = vadd.f32 0.0, %v1495
    %1497 = vmatmul.f32.gmra.mxu0 %v1290
    %v1498 = vpop.f32.mrf.mxu0
    %v1499 = vadd.f32 0.0, %v1498
    %1500 = vmatmul.f32.gmra.mxu0 %v1293
    %v1501 = vpop.f32.mrf.mxu0
    %v1502 = vadd.f32 0.0, %v1501
    %1503 = vmatmul.f32.gmra.mxu0 %v1296
    %v1504 = vpop.f32.mrf.mxu0
    %v1505 = vadd.f32 0.0, %v1504
    %1506 = vmatmul.f32.gmra.mxu0 %v1299
    %v1507 = vpop.f32.mrf.mxu0
    %v1508 = vadd.f32 0.0, %v1507
    %1509 = vmatmul.f32.gmra.mxu0 %v1302
    %v1510 = vpop.f32.mrf.mxu0
    %v1511 = vadd.f32 0.0, %v1510
    %1512 = vmatmul.f32.gmra.mxu0 %v1305
    %v1513 = vpop.f32.mrf.mxu0
    %v1514 = vadd.f32 0.0, %v1513
    %1515 = vmatmul.f32.gmra.mxu0 %v1308
    %v1516 = vpop.f32.mrf.mxu0
    %v1517 = vadd.f32 0.0, %v1516
    %1518 = vmatmul.f32.gmra.mxu0 %v1311
    %v1519 = vpop.f32.mrf.mxu0
    %v1520 = vadd.f32 0.0, %v1519
    %1521 = vmatmul.f32.gmra.mxu0 %v1314
    %v1522 = vpop.f32.mrf.mxu0
    %v1523 = vadd.f32 0.0, %v1522
    %1524 = vmatmul.f32.gmra.mxu0 %v1317
    %v1525 = vpop.f32.mrf.mxu0
    %v1526 = vadd.f32 0.0, %v1525
    %1527 = vmatmul.f32.gmra.mxu0 %v1320
    %v1528 = vpop.f32.mrf.mxu0
    %v1529 = vadd.f32 0.0, %v1528
    %1530 = vmatmul.f32.gmra.mxu0 %v1323
    %v1531 = vpop.f32.mrf.mxu0
    %v1532 = vadd.f32 0.0, %v1531
    %1533 = vmatmul.f32.gmra.mxu0 %v1326
    %v1534 = vpop.f32.mrf.mxu0
    %v1535 = vadd.f32 0.0, %v1534
    %1536 = vmatmul.f32.gmra.mxu0 %v1329
    %v1537 = vpop.f32.mrf.mxu0
    %v1538 = vadd.f32 0.0, %v1537
    %1539 = vmatmul.f32.gmra.mxu0 %v1332
    %v1540 = vpop.f32.mrf.mxu0
    %v1541 = vadd.f32 0.0, %v1540
    %1542 = vmatmul.f32.gmra.mxu0 %v1335
    %v1543 = vpop.f32.mrf.mxu0
    %v1544 = vadd.f32 0.0, %v1543
    %1545 = vmatmul.f32.gmra.mxu0 %v1338
    %v1546 = vpop.f32.mrf.mxu0
    %v1547 = vadd.f32 0.0, %v1546
    %1548 = vmatmul.f32.gmra.mxu0 %v1341
    %v1549 = vpop.f32.mrf.mxu0
    %v1550 = vadd.f32 0.0, %v1549
    %1551 = vmatmul.f32.gmra.mxu0 %v1344
    %v1552 = vpop.f32.mrf.mxu0
    %v1553 = vadd.f32 0.0, %v1552
    %1554 = vmatmul.f32.gmra.mxu0 %v1347
    %v1555 = vpop.f32.mrf.mxu0
    %v1556 = vadd.f32 0.0, %v1555
    %1557 = vmatmul.f32.gmra.mxu0 %v1350
    %v1558 = vpop.f32.mrf.mxu0
    %v1559 = vadd.f32 0.0, %v1558
    %1560 = vmatmul.f32.gmra.mxu0 %v1353
    %v1561 = vpop.f32.mrf.mxu0
    %v1562 = vadd.f32 0.0, %v1561
    %1563 = vmatmul.f32.gmra.mxu0 %v1356
    %v1564 = vpop.f32.mrf.mxu0
    %v1565 = vadd.f32 0.0, %v1564
    %1566 = vmatmul.f32.gmra.mxu0 %v1359
    %v1567 = vpop.f32.mrf.mxu0
    %v1568 = vadd.f32 0.0, %v1567
    %1569 = vmatmul.f32.gmra.mxu0 %v1362
    %v1570 = vpop.f32.mrf.mxu0
    %v1571 = vadd.f32 0.0, %v1570
    %1572 = vmatmul.f32.gmra.mxu0 %v1365
    %v1573 = vpop.f32.mrf.mxu0
    %v1574 = vadd.f32 0.0, %v1573
    %1575 = vmatmul.f32.gmra.mxu0 %v1368
    %v1576 = vpop.f32.mrf.mxu0
    %v1577 = vadd.f32 0.0, %v1576
    %1578 = vmatmul.f32.gmra.mxu0 %v1371
    %v1579 = vpop.f32.mrf.mxu0
    %v1580 = vadd.f32 0.0, %v1579
    %1581 = vmatmul.f32.gmra.mxu0 %v1374
    %v1582 = vpop.f32.mrf.mxu0
    %v1583 = vadd.f32 0.0, %v1582
    %1584 = vdwg.mxu0
    %v1585 = vand.u32 2147483647, %v1394
    %v1586 = vand.u32 2147483647, %v1397
    %v1587 = vand.u32 2147483647, %v1400
    %v1588 = vand.u32 2147483647, %v1403
    %v1589 = vand.u32 2147483647, %v1406
    %v1590 = vand.u32 2147483647, %v1409
    %v1591 = vand.u32 2147483647, %v1412
    %v1592 = vand.u32 2147483647, %v1415
    %v1593 = vand.u32 2147483647, %v1418
    %v1594 = vand.u32 2147483647, %v1421
    %v1595 = vand.u32 2147483647, %v1424
    %v1596 = vand.u32 2147483647, %v1427
    %v1597 = vand.u32 2147483647, %v1430
    %v1598 = vand.u32 2147483647, %v1433
    %v1599 = vand.u32 2147483647, %v1436
    %v1600 = vand.u32 2147483647, %v1439
    %v1601 = vand.u32 2147483647, %v1442
    %v1602 = vand.u32 2147483647, %v1445
    %v1603 = vand.u32 2147483647, %v1448
    %v1604 = vand.u32 2147483647, %v1451
    %v1605 = vand.u32 2147483647, %v1454
    %v1606 = vand.u32 2147483647, %v1457
    %v1607 = vand.u32 2147483647, %v1460
    %v1608 = vand.u32 2147483647, %v1463
    %v1609 = vand.u32 2147483647, %v1466
    %v1610 = vand.u32 2147483647, %v1469
    %v1611 = vand.u32 2147483647, %v1472
    %v1612 = vand.u32 2147483647, %v1475
    %v1613 = vand.u32 2147483647, %v1478
    %v1614 = vand.u32 2147483647, %v1481
    %v1615 = vand.u32 2147483647, %v1484
    %v1616 = vand.u32 2147483647, %v1487
    %v1617 = vand.u32 2147483647, %v1490
    %v1618 = vand.u32 2147483647, %v1493
    %v1619 = vand.u32 2147483647, %v1496
    %v1620 = vand.u32 2147483647, %v1499
    %v1621 = vand.u32 2147483647, %v1502
    %v1622 = vand.u32 2147483647, %v1505
    %v1623 = vand.u32 2147483647, %v1508
    %v1624 = vand.u32 2147483647, %v1511
    %v1625 = vand.u32 2147483647, %v1514
    %v1626 = vand.u32 2147483647, %v1517
    %v1627 = vand.u32 2147483647, %v1520
    %v1628 = vand.u32 2147483647, %v1523
    %v1629 = vand.u32 2147483647, %v1526
    %v1630 = vand.u32 2147483647, %v1529
    %v1631 = vand.u32 2147483647, %v1532
    %v1632 = vand.u32 2147483647, %v1535
    %v1633 = vand.u32 2147483647, %v1538
    %v1634 = vand.u32 2147483647, %v1541
    %v1635 = vand.u32 2147483647, %v1544
    %v1636 = vand.u32 2147483647, %v1547
    %v1637 = vand.u32 2147483647, %v1550
    %v1638 = vand.u32 2147483647, %v1553
    %v1639 = vand.u32 2147483647, %v1556
    %v1640 = vand.u32 2147483647, %v1559
    %v1641 = vand.u32 2147483647, %v1562
    %v1642 = vand.u32 2147483647, %v1565
    %v1643 = vand.u32 2147483647, %v1568
    %v1644 = vand.u32 2147483647, %v1571
    %v1645 = vand.u32 2147483647, %v1574
    %v1646 = vand.u32 2147483647, %v1577
    %v1647 = vand.u32 2147483647, %v1580
    %v1648 = vand.u32 2147483647, %v1583
    %v1649 = vsel %vm256, %v1585, 0.0
    %v1650 = vsel %vm256, %v1586, 0.0
    %v1651 = vadd.f32 %v1649, %v1650
    %v1652 = vsel %vm256, %v1587, 0.0
    %v1653 = vadd.f32 %v1651, %v1652
    %v1654 = vsel %vm256, %v1588, 0.0
    %v1655 = vadd.f32 %v1653, %v1654
    %v1656 = vsel %vm256, %v1589, 0.0
    %v1657 = vadd.f32 %v1655, %v1656
    %v1658 = vsel %vm256, %v1590, 0.0
    %v1659 = vadd.f32 %v1657, %v1658
    %v1660 = vsel %vm256, %v1591, 0.0
    %v1661 = vadd.f32 %v1659, %v1660
    %v1662 = vsel %vm256, %v1592, 0.0
    %v1663 = vadd.f32 %v1661, %v1662
    %v1664 = vsel %vm256, %v1593, 0.0
    %v1665 = vadd.f32 %v1663, %v1664
    %v1666 = vsel %vm256, %v1594, 0.0
    %v1667 = vadd.f32 %v1665, %v1666
    %v1668 = vsel %vm256, %v1595, 0.0
    %v1669 = vadd.f32 %v1667, %v1668
    %v1670 = vsel %vm256, %v1596, 0.0
    %v1671 = vadd.f32 %v1669, %v1670
    %v1672 = vsel %vm256, %v1597, 0.0
    %v1673 = vadd.f32 %v1671, %v1672
    %v1674 = vsel %vm256, %v1598, 0.0
    %v1675 = vadd.f32 %v1673, %v1674
    %v1676 = vsel %vm256, %v1599, 0.0
    %v1677 = vadd.f32 %v1675, %v1676
    %v1678 = vsel %vm256, %v1600, 0.0
    %v1679 = vadd.f32 %v1677, %v1678
    %v1680 = vsel %vm256, %v1601, 0.0
    %v1681 = vadd.f32 %v1679, %v1680
    %v1682 = vsel %vm256, %v1602, 0.0
    %v1683 = vadd.f32 %v1681, %v1682
    %v1684 = vsel %vm256, %v1603, 0.0
    %v1685 = vadd.f32 %v1683, %v1684
    %v1686 = vsel %vm256, %v1604, 0.0
    %v1687 = vadd.f32 %v1685, %v1686
    %v1688 = vsel %vm256, %v1605, 0.0
    %v1689 = vadd.f32 %v1687, %v1688
    %v1690 = vsel %vm256, %v1606, 0.0
    %v1691 = vadd.f32 %v1689, %v1690
    %v1692 = vsel %vm256, %v1607, 0.0
    %v1693 = vadd.f32 %v1691, %v1692
    %v1694 = vsel %vm256, %v1608, 0.0
    %v1695 = vadd.f32 %v1693, %v1694
    %v1696 = vsel %vm256, %v1609, 0.0
    %v1697 = vadd.f32 %v1695, %v1696
    %v1698 = vsel %vm256, %v1610, 0.0
    %v1699 = vadd.f32 %v1697, %v1698
    %v1700 = vsel %vm256, %v1611, 0.0
    %v1701 = vadd.f32 %v1699, %v1700
    %v1702 = vsel %vm256, %v1612, 0.0
    %v1703 = vadd.f32 %v1701, %v1702
    %v1704 = vsel %vm256, %v1613, 0.0
    %v1705 = vadd.f32 %v1703, %v1704
    %v1706 = vsel %vm256, %v1614, 0.0
    %v1707 = vadd.f32 %v1705, %v1706
    %v1708 = vsel %vm256, %v1615, 0.0
    %v1709 = vadd.f32 %v1707, %v1708
    %v1710 = vsel %vm256, %v1616, 0.0
    %v1711 = vadd.f32 %v1709, %v1710
    %v1712 = vsel %vm256, %v1617, 0.0
    %v1713 = vadd.f32 %v1711, %v1712
    %v1714 = vsel %vm256, %v1618, 0.0
    %v1715 = vadd.f32 %v1713, %v1714
    %v1716 = vsel %vm256, %v1619, 0.0
    %v1717 = vadd.f32 %v1715, %v1716
    %v1718 = vsel %vm256, %v1620, 0.0
    %v1719 = vadd.f32 %v1717, %v1718
    %v1720 = vsel %vm256, %v1621, 0.0
    %v1721 = vadd.f32 %v1719, %v1720
    %v1722 = vsel %vm256, %v1622, 0.0
    %v1723 = vadd.f32 %v1721, %v1722
    %v1724 = vsel %vm256, %v1623, 0.0
    %v1725 = vadd.f32 %v1723, %v1724
    %v1726 = vsel %vm256, %v1624, 0.0
    %v1727 = vadd.f32 %v1725, %v1726
    %v1728 = vsel %vm256, %v1625, 0.0
    %v1729 = vadd.f32 %v1727, %v1728
    %v1730 = vsel %vm256, %v1626, 0.0
    %v1731 = vadd.f32 %v1729, %v1730
    %v1732 = vsel %vm256, %v1627, 0.0
    %v1733 = vadd.f32 %v1731, %v1732
    %v1734 = vsel %vm256, %v1628, 0.0
    %v1735 = vadd.f32 %v1733, %v1734
    %v1736 = vsel %vm256, %v1629, 0.0
    %v1737 = vadd.f32 %v1735, %v1736
    %v1738 = vsel %vm256, %v1630, 0.0
    %v1739 = vadd.f32 %v1737, %v1738
    %v1740 = vsel %vm256, %v1631, 0.0
    %v1741 = vadd.f32 %v1739, %v1740
    %v1742 = vsel %vm256, %v1632, 0.0
    %v1743 = vadd.f32 %v1741, %v1742
    %v1744 = vsel %vm256, %v1633, 0.0
    %v1745 = vadd.f32 %v1743, %v1744
    %v1746 = vsel %vm256, %v1634, 0.0
    %v1747 = vadd.f32 %v1745, %v1746
    %v1748 = vsel %vm256, %v1635, 0.0
    %v1749 = vadd.f32 %v1747, %v1748
    %v1750 = vsel %vm256, %v1636, 0.0
    %v1751 = vadd.f32 %v1749, %v1750
    %v1752 = vsel %vm256, %v1637, 0.0
    %v1753 = vadd.f32 %v1751, %v1752
    %v1754 = vsel %vm256, %v1638, 0.0
    %v1755 = vadd.f32 %v1753, %v1754
    %v1756 = vsel %vm256, %v1639, 0.0
    %v1757 = vadd.f32 %v1755, %v1756
    %v1758 = vsel %vm256, %v1640, 0.0
    %v1759 = vadd.f32 %v1757, %v1758
    %v1760 = vsel %vm256, %v1641, 0.0
    %v1761 = vadd.f32 %v1759, %v1760
    %v1762 = vsel %vm256, %v1642, 0.0
    %v1763 = vadd.f32 %v1761, %v1762
    %v1764 = vsel %vm256, %v1643, 0.0
    %v1765 = vadd.f32 %v1763, %v1764
    %v1766 = vsel %vm256, %v1644, 0.0
    %v1767 = vadd.f32 %v1765, %v1766
    %v1768 = vsel %vm256, %v1645, 0.0
    %v1769 = vadd.f32 %v1767, %v1768
    %v1770 = vsel %vm256, %v1646, 0.0
    %v1771 = vadd.f32 %v1769, %v1770
    %v1772 = vsel %vm256, %v1647, 0.0
    %v1773 = vadd.f32 %v1771, %v1772
    %v1774 = vsel %vm256, %v1648, 0.0
    %v1775 = vadd.f32 %v1773, %v1774
    %1776 = vadd.xlane.f32.xlu0 %v1775
    %v1777 = vpop.xlane.xlu0 %1776
    %v1778 = vrot.slane %v1777, 4
    %v1779 = vadd.f32 %v1777, %v1778
    %v1780 = vrot.slane %v1779, 2
    %v1781 = vadd.f32 %v1779, %v1780
    %v1782 = vrot.slane %v1781, 1
    %v1783 = vadd.f32 %v1781, %v1782
    %s1784 = vtos %v1783
    %v1785 = vstv %s1784
    %vm1786 = vcmask 0
    %1787 = vst.msk [vmem:[#allocation7] sm:$0x1] %vm1786, %v1785
    // Predicated region
    $region34: #{tpu_custom_call.1} parent=1 // pred_check
      _
    $region35: #{tpu_custom_call.1} parent=1 // pred_check_branch
      %1789 = sbr.rel (0) target = $region37
    $region36: #{tpu_custom_call.1} parent=1 // pred_region
      %1791 = vsyncadd [#allocation4], 0
      %s1793 = sshll.u32 [#allocation7], 4
      %s1794 = int_to_ptr.vmem [resolvable:$true] %s1793
      %s1795 = sshll.u32 %s6, 4
      %s1796 = int_to_ptr.hbm [resolvable:$true] %s1795
      %1798 = dma.vmem_to_hbm [thread:$0]  %s1794, 16, %s1796, [#allocation4]
    $region37: #{tpu_custom_call.1} parent=1 // pred_fallthru
      _
    // Predicated region
    $region38: #{tpu_custom_call.1} parent=1 // pred_check
      _
    $region39: #{tpu_custom_call.1} parent=1 // pred_check_branch
      %1800 = sbr.rel (0) target = $region41
    $region40: #{tpu_custom_call.1} parent=1 // pred_region
      %1802 = dma.done [#allocation4], 16
    $region41: #{tpu_custom_call.1} parent=1 // pred_fallthru
      _
    %1803 = vsyncpa [#allocation3], 1
    %1804 = vsyncpa [#allocation6], 1
    %1805 = vsyncpa [#allocation4], 1

</llo_original>
